<compile_context>
chip_gen: v7x
topology: tpu7x:2x2x1
jax: 0.10.0
libtpu: 0.0.40
codegen_flags: <defaults>
</compile_context>

<pallas_src>
import functools

import jax
import jax.numpy as jnp
from jax.experimental import pallas as pl
from jax.experimental.pallas import tpu as pltpu

_SQRT2_INV = 0.7071067811865476        # 1 / sqrt(2)
_SQRT_2_OVER_PI = 0.7978845608028654   # sqrt(2 / pi)


def _gelu(x, approx):
    if approx:
        # tanh-approx GELU: transcendental goes to the EUP slot instead of a ~15-20 op VALU
        # erf polynomial. ~1e-3 numerics delta vs torch's exact GELU (opt-in).
        return 0.5 * x * (1.0 + jnp.tanh(_SQRT_2_OVER_PI * (x + 0.044715 * (x * x * x))))
    # Exact erf GELU — matches PyTorch nn.GELU() default.
    return 0.5 * x * (1.0 + jax.lax.erf(x * _SQRT2_INV))


def _mlp_kernel(x_ref, w1_ref, b1_ref, w2_ref, b2_ref, o_ref, acc_ref,
                *, th, n_h, approx_gelu):
    # x tile in the matmul (weight) dtype: bf16 by default -> native MXU path.
    x = x_ref[...].astype(w1_ref.dtype)                    # (TM, C_in)
    acc_ref[...] = jnp.zeros_like(acc_ref)                 # f32 (TM, C_out)

    @pl.loop(0, n_h)
    def _(k):
        off = pl.multiple_of(k * th, th)
        # fc1 chunk (f32 acc on MXU) + bias + GELU.
        h = jnp.dot(x, w1_ref[:, pl.ds(off, th)], preferred_element_type=jnp.float32)
        h = _gelu(h + b1_ref[:, pl.ds(off, th)], approx_gelu)
        # fc2 partial for this hidden chunk, accumulated in f32.
        acc_ref[...] += jnp.dot(h.astype(w2_ref.dtype), w2_ref[pl.ds(off, th), :],
                                preferred_element_type=jnp.float32)

    o_ref[...] = (acc_ref[...] + b2_ref[...]).astype(o_ref.dtype)


def prepare_mlp_params(w1, b1, w2, b2, dtype=jnp.bfloat16):
    """One-time parameter prep (hoisted out of the per-forward path).

    torch nn.Linear stores weight as (out, in) and computes x @ W^T + b; pre-transpose so the
    kernel does plain x @ W.  Default dtype is bf16: the MXU is bf16-native on v5e/v6e/v7x and
    bf16 halves resident-weight VMEM/HBM; accumulation stays f32 in-kernel.  Biases stay f32
    (added after the f32 accumulation)."""
    w1_t = jnp.asarray(w1, dtype).T                      # (C_in, H)
    w2_t = jnp.asarray(w2, dtype).T                      # (H, C_out)
    b1_r = jnp.asarray(b1, jnp.float32).reshape(1, -1)   # (1, H)
    b2_r = jnp.asarray(b2, jnp.float32).reshape(1, -1)   # (1, C_out)
    return w1_t, b1_r, w2_t, b2_r


def _round_up(n, m):
    return (n + m - 1) // m * m


def mlp_forward(x, w1_t, b1, w2_t, b2, *, block_m=512, block_h=512,
                approx_gelu=False, vmem_budget_bytes=40 << 20):
    """x: (..., C_in). w1_t: (C_in, H), b1: (1, H), w2_t: (H, C_out), b2: (1, C_out)
    as produced by `prepare_mlp_params`. Returns (..., C_out)."""
    *lead, c_in = x.shape
    assert w1_t.shape[0] == c_in, "in_features mismatch"
    hidden = w1_t.shape[1]
    c_out = w2_t.shape[1]
    assert w2_t.shape[0] == hidden and b1.shape == (1, hidden) and b2.shape == (1, c_out)

    x2 = x.reshape(-1, c_in)
    m = x2.shape[0]

    # Hidden-dim chunk: lane-aligned size that divides H, else whole H in one pass.
    th = block_h if (hidden % block_h == 0 and block_h % 128 == 0) else hidden
    n_h = hidden // th

    w_bytes = jnp.dtype(w1_t.dtype).itemsize
    x_bytes = jnp.dtype(x.dtype).itemsize

    # Row tile: multiple of 8 sublanes, capped at block_m; shrink until VMEM estimate fits.
    tm = min(block_m, _round_up(m, 8))

    def vmem_est(tm_):
        weights = (c_in * hidden + hidden * c_out) * w_bytes + (hidden + c_out) * 4  # x1 (Buffered(1))
        tiles = 2 * tm_ * c_in * x_bytes + 2 * tm_ * c_out * x_bytes                 # double-buffered
        scratch = tm_ * c_out * 4                                                    # f32 accumulator
        interm = tm_ * th * 4 + tm_ * th * w_bytes + tm_ * c_in * w_bytes            # h (f32+cast) + x cast
        return weights + tiles + scratch + interm

    while vmem_est(tm) > vmem_budget_bytes and tm > 128:
        tm = max(128, tm // 2)

    grid = (pl.cdiv(m, tm),)   # no jnp.pad: ragged tail block is masked by Pallas

    try:
        phys_vmem = pltpu.get_tpu_info().vmem_capacity_bytes
    except Exception:
        phys_vmem = 64 << 20   # conservative (v7x per-TC)
    vmem_limit = int(min(phys_vmem - (4 << 20),
                         max(16 << 20, int(vmem_est(tm) * 1.5))))

    kernel = functools.partial(_mlp_kernel, th=th, n_h=n_h, approx_gelu=approx_gelu)

    cost = pl.CostEstimate(
        flops=2 * m * c_in * hidden + 2 * m * hidden * c_out,
        transcendentals=m * hidden,
        bytes_accessed=(m * c_in * x_bytes + m * c_out * x_bytes
                        + (c_in * hidden + hidden * c_out) * w_bytes
                        + (hidden + c_out) * 4),
    )

    def build(single_buffer_weights):
        def resident(shape):
            # Constant index_map -> weights stay in VMEM across the whole grid.
            if single_buffer_weights:
                return pl.BlockSpec(shape, lambda i: (0, 0), pipeline_mode=pl.Buffered(1))
            return pl.BlockSpec(shape, lambda i: (0, 0))

        return pl.pallas_call(
            kernel,
            out_shape=jax.ShapeDtypeStruct((m, c_out), x.dtype),
            grid_spec=pltpu.PrefetchScalarGridSpec(
                num_scalar_prefetch=0,
                grid=grid,
                in_specs=[
                    pl.BlockSpec((tm, c_in), lambda i: (i, 0)),   # x row tile (pipelined)
                    resident((c_in, hidden)),                     # W1^T
                    resident((1, hidden)),                        # b1
                    resident((hidden, c_out)),                    # W2^T
                    resident((1, c_out)),                         # b2
                ],
                out_specs=pl.BlockSpec((tm, c_out), lambda i: (i, 0)),
                scratch_shapes=[pltpu.VMEM((tm, c_out), jnp.float32)],
            ),
            compiler_params=pltpu.CompilerParams(
                dimension_semantics=("parallel",),
                vmem_limit_bytes=vmem_limit,
            ),
            cost_estimate=cost,
        )

    try:
        out = build(True)(x2, w1_t, b1, w2_t, b2)
    except Exception:
        # Fallback for JAX versions without BlockSpec(pipeline_mode=...) support.
        out = build(False)(x2, w1_t, b1, w2_t, b2)

    return out.reshape(*lead, c_out)


def _reference(x, w1, b1, w2, b2):
    """Pure-JAX mirror of the PyTorch forward (drop=0.0 => dropout is identity)."""
    h = x @ w1.T + b1
    h = 0.5 * h * (1.0 + jax.lax.erf(h * _SQRT2_INV))
    return h @ w2.T + b2


if __name__ == "__main__":
    # Small, module-consistent shapes: tokens (B, N, C) with C=in=out=128, hidden=4*C=512.
    in_features, hidden_features, out_features = 128, 512, 128
    B, N = 2, 64  # -> M = 128 flattened tokens

    key = jax.random.PRNGKey(0)
    k_x, k_w1, k_b1, k_w2, k_b2 = jax.random.split(key, 5)

    x = jax.random.normal(k_x, (B, N, in_features), jnp.float32)
    # trunc_normal(std=0.02) approximated by normal * 0.02 (deterministic).
    w1 = 0.02 * jax.random.normal(k_w1, (hidden_features, in_features), jnp.float32)
    b1 = 0.02 * jax.random.normal(k_b1, (hidden_features,), jnp.float32)
    w2 = 0.02 * jax.random.normal(k_w2, (out_features, hidden_features), jnp.float32)
    b2 = 0.02 * jax.random.normal(k_b2, (out_features,), jnp.float32)

    ref = _reference(x, w1, b1, w2, b2)

    # 1) f32 weights, exact GELU -> numerics match torch forward tightly.
    p32 = prepare_mlp_params(w1, b1, w2, b2, dtype=jnp.float32)
    out32 = jax.block_until_ready(mlp_forward(x, *p32))
    assert out32.shape == (B, N, out_features)
    assert jnp.max(jnp.abs(out32 - ref)) < 1e-4, "f32 path mismatch vs reference"

    # 2) Default bf16-MXU path (perf path); looser tolerance for bf16 rounding of x/W.
    pbf = prepare_mlp_params(w1, b1, w2, b2)
    outbf = jax.block_until_ready(mlp_forward(x, *pbf))
    assert outbf.shape == (B, N, out_features)
    assert jnp.max(jnp.abs(outbf - ref)) < 2e-2, "bf16 path mismatch vs reference"

    # 3) Ragged row count (m not a multiple of the tile): no jnp.pad, tail block masked.
    xr = x[:1, :50]                                  # M = 50
    outr = jax.block_until_ready(mlp_forward(xr, *p32))
    refr = _reference(xr, w1, b1, w2, b2)
    assert jnp.max(jnp.abs(outr - refr)) < 1e-4, "ragged-tail mismatch vs reference"

    print("KERNEL_OK")
</pallas_src>

<mosaic_0001>
module attributes {stable_mosaic.version = 11 : i64} {
  func.func @_mlp_kernel(%arg0: i32, %arg1: memref<128x128xf32, #tpu.memory_space<vmem>>, %arg2: memref<128x512xf32, #tpu.memory_space<vmem>>, %arg3: memref<1x512xf32, #tpu.memory_space<vmem>>, %arg4: memref<512x128xf32, #tpu.memory_space<vmem>>, %arg5: memref<1x128xf32, #tpu.memory_space<vmem>>, %arg6: memref<128x128xf32, #tpu.memory_space<vmem>>, %arg7: memref<128x128xf32, #tpu.memory_space<vmem>>) attributes {dimension_semantics = [#tpu.dimension_semantics<parallel>], iteration_bounds = array<i64: 1>, scalar_prefetch = 0 : i64, scratch_operands = 1 : i64, tpu.core_type = #tpu.core_type<tc>, window_params = [{transform_indices = @transform_0, window_bounds = array<i64: 128, 128>}, {pipeline_mode = #tpu.pipeline_mode<synchronous>, transform_indices = @transform_1, window_bounds = array<i64: 128, 512>}, {pipeline_mode = #tpu.pipeline_mode<synchronous>, transform_indices = @transform_2, window_bounds = array<i64: 1, 512>}, {pipeline_mode = #tpu.pipeline_mode<synchronous>, transform_indices = @transform_3, window_bounds = array<i64: 512, 128>}, {pipeline_mode = #tpu.pipeline_mode<synchronous>, transform_indices = @transform_4, window_bounds = array<i64: 1, 128>}, {transform_indices = @transform_5, window_bounds = array<i64: 128, 128>}]} {
    %c0 = arith.constant 0 : index
    %c0_0 = arith.constant 0 : index
    %0 = vector.load %arg1[%c0, %c0_0] : memref<128x128xf32, #tpu.memory_space<vmem>>, vector<128x128xf32>
    %cst = arith.constant 0.000000e+00 : f32
    %1 = vector.broadcast %cst : f32 to vector<128x128xf32>
    %c0_1 = arith.constant 0 : index
    %c0_2 = arith.constant 0 : index
    %2 = vector.load %arg7[%c0_1, %c0_2] : memref<128x128xf32, #tpu.memory_space<vmem>>, vector<128x128xf32>
    tpu.vector_store %arg7[%c0_1, %c0_2], %1 {strides = array<i32>} : memref<128x128xf32, #tpu.memory_space<vmem>>, vector<128x128xf32>,
    %c0_i32 = arith.constant 0 : i32
    %c1_i32 = arith.constant 1 : i32
    %3 = arith.muli %c0_i32, %c1_i32 : i32
    %c0_i32_3 = arith.constant 0 : i32
    %4 = arith.addi %c0_i32_3, %3 : i32
    %c512_i32 = arith.constant 512 : i32
    %5 = arith.muli %4, %c512_i32 : i32
    %6 = tpu.assume_multiple %5, 512 : i32
    %c0_4 = arith.constant 0 : index
    %7 = arith.index_cast %6 : i32 to index
    %8 = vector.load %arg2[%c0_4, %7] : memref<128x512xf32, #tpu.memory_space<vmem>>, vector<128x512xf32>
    %cst_5 = arith.constant dense<0.000000e+00> : vector<128x512xf32>
    %9 = tpu.matmul %0, %8, %cst_5 {dimension_numbers = #tpu.dot_dimension_numbers<[1], [0], [0], [1], [0, 0, 1, 1], [], []>} : vector<128x128xf32>, vector<128x512xf32>, vector<128x512xf32> -> vector<128x512xf32>
    %c0_6 = arith.constant 0 : index
    %10 = arith.index_cast %6 : i32 to index
    %11 = vector.load %arg3[%c0_6, %10] : memref<1x512xf32, #tpu.memory_space<vmem>>, vector<1x512xf32>
    %12 = vector.broadcast %11 : vector<1x512xf32> to vector<128x512xf32>
    %13 = arith.addf %9, %12 : vector<128x512xf32>
    %cst_7 = arith.constant 5.000000e-01 : f32
    %14 = vector.broadcast %cst_7 : f32 to vector<128x512xf32>
    %15 = arith.mulf %14, %13 : vector<128x512xf32>
    %cst_8 = arith.constant 0.707106769 : f32
    %16 = vector.broadcast %cst_8 : f32 to vector<128x512xf32>
    %17 = arith.mulf %13, %16 : vector<128x512xf32>
    %18 = math.erf %17 : vector<128x512xf32>
    %cst_9 = arith.constant 1.000000e+00 : f32
    %19 = vector.broadcast %cst_9 : f32 to vector<128x512xf32>
    %20 = arith.addf %19, %18 : vector<128x512xf32>
    %21 = arith.mulf %15, %20 : vector<128x512xf32>
    %c0_10 = arith.constant 0 : index
    %c0_11 = arith.constant 0 : index
    %22 = vector.load %arg7[%c0_10, %c0_11] : memref<128x128xf32, #tpu.memory_space<vmem>>, vector<128x128xf32>
    %23 = arith.index_cast %6 : i32 to index
    %c0_12 = arith.constant 0 : index
    %24 = vector.load %arg4[%23, %c0_12] : memref<512x128xf32, #tpu.memory_space<vmem>>, vector<512x128xf32>
    %cst_13 = arith.constant dense<0.000000e+00> : vector<128x128xf32>
    %25 = tpu.matmul %21, %24, %cst_13 {dimension_numbers = #tpu.dot_dimension_numbers<[1], [0], [0], [1], [0, 0, 1, 1], [], []>} : vector<128x512xf32>, vector<512x128xf32>, vector<128x128xf32> -> vector<128x128xf32>
    %26 = arith.addf %22, %25 : vector<128x128xf32>
    %c0_14 = arith.constant 0 : index
    %c0_15 = arith.constant 0 : index
    %27 = vector.load %arg7[%c0_14, %c0_15] : memref<128x128xf32, #tpu.memory_space<vmem>>, vector<128x128xf32>
    tpu.vector_store %arg7[%c0_14, %c0_15], %26 {strides = array<i32>} : memref<128x128xf32, #tpu.memory_space<vmem>>, vector<128x128xf32>,
    %c1_i32_16 = arith.constant 1 : i32
    %c0_17 = arith.constant 0 : index
    %c0_18 = arith.constant 0 : index
    %28 = vector.load %arg7[%c0_17, %c0_18] : memref<128x128xf32, #tpu.memory_space<vmem>>, vector<128x128xf32>
    %c0_19 = arith.constant 0 : index
    %c0_20 = arith.constant 0 : index
    %29 = vector.load %arg5[%c0_19, %c0_20] : memref<1x128xf32, #tpu.memory_space<vmem>>, vector<1x128xf32>
    %30 = vector.broadcast %29 : vector<1x128xf32> to vector<128x128xf32>
    %31 = arith.addf %28, %30 : vector<128x128xf32>
    %c0_21 = arith.constant 0 : index
    %c0_22 = arith.constant 0 : index
    %32 = vector.load %arg6[%c0_21, %c0_22] : memref<128x128xf32, #tpu.memory_space<vmem>>, vector<128x128xf32>
    tpu.vector_store %arg6[%c0_21, %c0_22], %31 {strides = array<i32>} : memref<128x128xf32, #tpu.memory_space<vmem>>, vector<128x128xf32>,
    return
  }
  func.func @transform_0(%arg0: i32) -> (i32, i32) {
    %c0_i32 = arith.constant 0 : i32
    %c0_i32_0 = arith.constant 0 : i32
    return %arg0, %c0_i32 : i32, i32
  }
  func.func @transform_1(%arg0: i32) -> (i32, i32) {
    %c0_i32 = arith.constant 0 : i32
    %c0_i32_0 = arith.constant 0 : i32
    %c0_i32_1 = arith.constant 0 : i32
    return %c0_i32, %c0_i32_0 : i32, i32
  }
  func.func @transform_2(%arg0: i32) -> (i32, i32) {
    %c0_i32 = arith.constant 0 : i32
    %c0_i32_0 = arith.constant 0 : i32
    %c0_i32_1 = arith.constant 0 : i32
    return %c0_i32, %c0_i32_0 : i32, i32
  }
  func.func @transform_3(%arg0: i32) -> (i32, i32) {
    %c0_i32 = arith.constant 0 : i32
    %c0_i32_0 = arith.constant 0 : i32
    %c0_i32_1 = arith.constant 0 : i32
    return %c0_i32, %c0_i32_0 : i32, i32
  }
  func.func @transform_4(%arg0: i32) -> (i32, i32) {
    %c0_i32 = arith.constant 0 : i32
    %c0_i32_0 = arith.constant 0 : i32
    %c0_i32_1 = arith.constant 0 : i32
    return %c0_i32, %c0_i32_0 : i32, i32
  }
  func.func @transform_5(%arg0: i32) -> (i32, i32) {
    %c0_i32 = arith.constant 0 : i32
    %c0_i32_0 = arith.constant 0 : i32
    return %arg0, %c0_i32 : i32, i32
  }
}

module attributes {stable_mosaic.version = 11 : i64} {
  func.func @_mlp_kernel(%arg0: i32, %arg1: memref<128x128xf32, #tpu.memory_space<vmem>>, %arg2: memref<128x512xf32, #tpu.memory_space<vmem>>, %arg3: memref<1x512xf32, #tpu.memory_space<vmem>>, %arg4: memref<512x128xf32, #tpu.memory_space<vmem>>, %arg5: memref<1x128xf32, #tpu.memory_space<vmem>>, %arg6: memref<128x128xf32, #tpu.memory_space<vmem>>, %arg7: memref<128x128xf32, #tpu.memory_space<vmem>>) attributes {dimension_semantics = [#tpu.dimension_semantics<parallel>], iteration_bounds = array<i64: 1>, scalar_prefetch = 0 : i64, scratch_operands = 1 : i64, tpu.core_type = #tpu.core_type<tc>, window_params = [{transform_indices = @transform_0, window_bounds = array<i64: 128, 128>}, {pipeline_mode = #tpu.pipeline_mode<synchronous>, transform_indices = @transform_1, window_bounds = array<i64: 128, 512>}, {pipeline_mode = #tpu.pipeline_mode<synchronous>, transform_indices = @transform_2, window_bounds = array<i64: 1, 512>}, {pipeline_mode = #tpu.pipeline_mode<synchronous>, transform_indices = @transform_3, window_bounds = array<i64: 512, 128>}, {pipeline_mode = #tpu.pipeline_mode<synchronous>, transform_indices = @transform_4, window_bounds = array<i64: 1, 128>}, {transform_indices = @transform_5, window_bounds = array<i64: 128, 128>}]} {
    %c0 = arith.constant 0 : index
    %c0_0 = arith.constant 0 : index
    %0 = vector.load %arg1[%c0, %c0_0] : memref<128x128xf32, #tpu.memory_space<vmem>>, vector<128x128xf32>
    %cst = arith.constant 0.000000e+00 : f32
    %1 = vector.broadcast %cst : f32 to vector<128x128xf32>
    %c0_1 = arith.constant 0 : index
    %c0_2 = arith.constant 0 : index
    %2 = vector.load %arg7[%c0_1, %c0_2] : memref<128x128xf32, #tpu.memory_space<vmem>>, vector<128x128xf32>
    tpu.vector_store %arg7[%c0_1, %c0_2], %1 {strides = array<i32>} : memref<128x128xf32, #tpu.memory_space<vmem>>, vector<128x128xf32>,
    %c0_i32 = arith.constant 0 : i32
    %c1_i32 = arith.constant 1 : i32
    %3 = arith.muli %c0_i32, %c1_i32 : i32
    %c0_i32_3 = arith.constant 0 : i32
    %4 = arith.addi %c0_i32_3, %3 : i32
    %c512_i32 = arith.constant 512 : i32
    %5 = arith.muli %4, %c512_i32 : i32
    %6 = tpu.assume_multiple %5, 512 : i32
    %c0_4 = arith.constant 0 : index
    %7 = arith.index_cast %6 : i32 to index
    %8 = vector.load %arg2[%c0_4, %7] : memref<128x512xf32, #tpu.memory_space<vmem>>, vector<128x512xf32>
    %cst_5 = arith.constant dense<0.000000e+00> : vector<128x512xf32>
    %9 = tpu.matmul %0, %8, %cst_5 {dimension_numbers = #tpu.dot_dimension_numbers<[1], [0], [0], [1], [0, 0, 1, 1], [], []>} : vector<128x128xf32>, vector<128x512xf32>, vector<128x512xf32> -> vector<128x512xf32>
    %c0_6 = arith.constant 0 : index
    %10 = arith.index_cast %6 : i32 to index
    %11 = vector.load %arg3[%c0_6, %10] : memref<1x512xf32, #tpu.memory_space<vmem>>, vector<1x512xf32>
    %12 = vector.broadcast %11 : vector<1x512xf32> to vector<128x512xf32>
    %13 = arith.addf %9, %12 : vector<128x512xf32>
    %cst_7 = arith.constant 5.000000e-01 : f32
    %14 = vector.broadcast %cst_7 : f32 to vector<128x512xf32>
    %15 = arith.mulf %14, %13 : vector<128x512xf32>
    %cst_8 = arith.constant 0.707106769 : f32
    %16 = vector.broadcast %cst_8 : f32 to vector<128x512xf32>
    %17 = arith.mulf %13, %16 : vector<128x512xf32>
    %18 = math.erf %17 : vector<128x512xf32>
    %cst_9 = arith.constant 1.000000e+00 : f32
    %19 = vector.broadcast %cst_9 : f32 to vector<128x512xf32>
    %20 = arith.addf %19, %18 : vector<128x512xf32>
    %21 = arith.mulf %15, %20 : vector<128x512xf32>
    %c0_10 = arith.constant 0 : index
    %c0_11 = arith.constant 0 : index
    %22 = vector.load %arg7[%c0_10, %c0_11] : memref<128x128xf32, #tpu.memory_space<vmem>>, vector<128x128xf32>
    %23 = arith.index_cast %6 : i32 to index
    %c0_12 = arith.constant 0 : index
    %24 = vector.load %arg4[%23, %c0_12] : memref<512x128xf32, #tpu.memory_space<vmem>>, vector<512x128xf32>
    %cst_13 = arith.constant dense<0.000000e+00> : vector<128x128xf32>
    %25 = tpu.matmul %21, %24, %cst_13 {dimension_numbers = #tpu.dot_dimension_numbers<[1], [0], [0], [1], [0, 0, 1, 1], [], []>} : vector<128x512xf32>, vector<512x128xf32>, vector<128x128xf32> -> vector<128x128xf32>
    %26 = arith.addf %22, %25 : vector<128x128xf32>
    %c0_14 = arith.constant 0 : index
    %c0_15 = arith.constant 0 : index
    %27 = vector.load %arg7[%c0_14, %c0_15] : memref<128x128xf32, #tpu.memory_space<vmem>>, vector<128x128xf32>
    tpu.vector_store %arg7[%c0_14, %c0_15], %26 {strides = array<i32>} : memref<128x128xf32, #tpu.memory_space<vmem>>, vector<128x128xf32>,
    %c1_i32_16 = arith.constant 1 : i32
    %c0_17 = arith.constant 0 : index
    %c0_18 = arith.constant 0 : index
    %28 = vector.load %arg7[%c0_17, %c0_18] : memref<128x128xf32, #tpu.memory_space<vmem>>, vector<128x128xf32>
    %c0_19 = arith.constant 0 : index
    %c0_20 = arith.constant 0 : index
    %29 = vector.load %arg5[%c0_19, %c0_20] : memref<1x128xf32, #tpu.memory_space<vmem>>, vector<1x128xf32>
    %30 = vector.broadcast %29 : vector<1x128xf32> to vector<128x128xf32>
    %31 = arith.addf %28, %30 : vector<128x128xf32>
    %c0_21 = arith.constant 0 : index
    %c0_22 = arith.constant 0 : index
    %32 = vector.load %arg6[%c0_21, %c0_22] : memref<128x128xf32, #tpu.memory_space<vmem>>, vector<128x128xf32>
    tpu.vector_store %arg6[%c0_21, %c0_22], %31 {strides = array<i32>} : memref<128x128xf32, #tpu.memory_space<vmem>>, vector<128x128xf32>,
    return
  }
  func.func @transform_0(%arg0: i32) -> (i32, i32) {
    %c0_i32 = arith.constant 0 : i32
    %c0_i32_0 = arith.constant 0 : i32
    return %arg0, %c0_i32 : i32, i32
  }
  func.func @transform_1(%arg0: i32) -> (i32, i32) {
    %c0_i32 = arith.constant 0 : i32
    %c0_i32_0 = arith.constant 0 : i32
    %c0_i32_1 = arith.constant 0 : i32
    return %c0_i32, %c0_i32_0 : i32, i32
  }
  func.func @transform_2(%arg0: i32) -> (i32, i32) {
    %c0_i32 = arith.constant 0 : i32
    %c0_i32_0 = arith.constant 0 : i32
    %c0_i32_1 = arith.constant 0 : i32
    return %c0_i32, %c0_i32_0 : i32, i32
  }
  func.func @transform_3(%arg0: i32) -> (i32, i32) {
    %c0_i32 = arith.constant 0 : i32
    %c0_i32_0 = arith.constant 0 : i32
    %c0_i32_1 = arith.constant 0 : i32
    return %c0_i32, %c0_i32_0 : i32, i32
  }
  func.func @transform_4(%arg0: i32) -> (i32, i32) {
    %c0_i32 = arith.constant 0 : i32
    %c0_i32_0 = arith.constant 0 : i32
    %c0_i32_1 = arith.constant 0 : i32
    return %c0_i32, %c0_i32_0 : i32, i32
  }
  func.func @transform_5(%arg0: i32) -> (i32, i32) {
    %c0_i32 = arith.constant 0 : i32
    %c0_i32_0 = arith.constant 0 : i32
    return %arg0, %c0_i32 : i32, i32
  }
}

</mosaic_0001>

<llo_original>
// kernel: tpu_custom_call.1
$region0: #{tpu_custom_call.1}
  #allocation0 [shape = 'u32[]', space=smem, size = 0x4, offset = 0x4, fixed_abs, tag = 'smem constant byte address 0x4 - core index']
  #allocation1 [shape = 'u32[144,128]{1,0:T(1,128)}', space=vmem, size = 0x12000, scoped, tag = 'internal scratch']
  #allocation2 [shape = 'f32[128,128]{1,0:T(8,128)}', space=vmem, size = 0x10000, scoped, tag = 'scratch operand']
  %s0 = inlined_call_operand.hbm [shape: f32[128,128], index: 0, kind: input, shape index: {}]
  %s1 = inlined_call_operand.hbm [shape: f32[128,512], index: 1, kind: input, shape index: {}]
  %s2 = inlined_call_operand.vmem [shape: f32[1,512], index: 2, kind: input, shape index: {}]
  %s3 = inlined_call_operand.hbm [shape: f32[512,128], index: 3, kind: input, shape index: {}]
  %s4 = inlined_call_operand.vmem [shape: f32[1,128], index: 4, kind: input, shape index: {}]
  %s5 = inlined_call_operand.hbm [shape: f32[128,128], index: 5, kind: output, shape index: {}]
  %s6 = sld [smem:[#allocation0]]
  $region42: #{tpu_custom_call.1} parent=0
    _
  %s8 = ssub.s32 1, %s6
  %s9 = scalar_select 0, %s8, %s6
  $region1: #{tpu_custom_call.1} parent=0
    #allocation3 [shape = 'u8[65536]{0}', space=vmem, size = 0x10000, scoped, tag = 'input window, operand 0, single buffered']
    #allocation4 [shape = 's32[1]{0}', space=sflag, size = 0x4, scoped, tag = 'scoped memory for tpu_custom_call.1']
    #allocation5 [shape = 's32[1]{0}', space=sflag, size = 0x4, scoped, tag = 'scoped memory for tpu_custom_call.1']
    #allocation6 [shape = 'u8[262144]{0}', space=vmem, size = 0x40000, scoped, tag = 'input window, operand 1, single buffered']
    #allocation7 [shape = 's32[1]{0}', space=sflag, size = 0x4, scoped, tag = 'scoped memory for tpu_custom_call.1']
    #allocation8 [shape = 'u8[262144]{0}', space=vmem, size = 0x40000, scoped, tag = 'input window, operand 3, single buffered']
    #allocation9 [shape = 'u8[65536]{0}', space=vmem, size = 0x10000, scoped, tag = 'output window, operand 0, single buffered']
    %10 = vsyncpa [#allocation4], 0
    %11 = vsyncpa [#allocation7], 0
    %12 = vsyncpa [#allocation5], 0
    // Predicated region
    $region2: #{tpu_custom_call.1} parent=1 // pred_check
      _
    $region3: #{tpu_custom_call.1} parent=1 // pred_check_branch
      %14 = sbr.rel (0) target = $region5
    $region4: #{tpu_custom_call.1} parent=1 // pred_region
      %s16 = ssub.s32 2048, 2048
      %17 = vsyncadd [#allocation4], %s16
      %s18 = sshll.u32 [#allocation3], 4
      %s19 = int_to_ptr.vmem [resolvable:$true] %s18
      %24 = dma.hbm_to_vmem [thread:$0]  %s0, 2048, %s19, [#allocation4], 128, 128, 8
    $region5: #{tpu_custom_call.1} parent=1 // pred_fallthru
      _
    // Predicated region
    $region6: #{tpu_custom_call.1} parent=1 // pred_check
      _
    $region7: #{tpu_custom_call.1} parent=1 // pred_check_branch
      %26 = sbr.rel (0) target = $region9
    $region8: #{tpu_custom_call.1} parent=1 // pred_region
      %s28 = ssub.s32 8192, 8192
      %29 = vsyncadd [#allocation7], %s28
      %s30 = sshll.u32 [#allocation6], 4
      %s31 = int_to_ptr.vmem [resolvable:$true] %s30
      %36 = dma.hbm_to_vmem [thread:$0]  %s1, 8192, %s31, [#allocation7], 512, 512, 32
    $region9: #{tpu_custom_call.1} parent=1 // pred_fallthru
      _
    // Predicated region
    $region10: #{tpu_custom_call.1} parent=1 // pred_check
      _
    $region11: #{tpu_custom_call.1} parent=1 // pred_check_branch
      %38 = sbr.rel (0) target = $region13
    $region12: #{tpu_custom_call.1} parent=1 // pred_region
      _
    $region13: #{tpu_custom_call.1} parent=1 // pred_fallthru
      _
    // Predicated region
    $region14: #{tpu_custom_call.1} parent=1 // pred_check
      _
    $region15: #{tpu_custom_call.1} parent=1 // pred_check_branch
      %40 = sbr.rel (0) target = $region17
    $region16: #{tpu_custom_call.1} parent=1 // pred_region
      %s42 = ssub.s32 8192, 8192
      %43 = vsyncadd [#allocation7], %s42
      %s44 = sshll.u32 [#allocation8], 4
      %s45 = int_to_ptr.vmem [resolvable:$true] %s44
      %50 = dma.hbm_to_vmem [thread:$0]  %s3, 8192, %s45, [#allocation7], 128, 128, 8
    $region17: #{tpu_custom_call.1} parent=1 // pred_fallthru
      _
    // Predicated region
    $region18: #{tpu_custom_call.1} parent=1 // pred_check
      _
    $region19: #{tpu_custom_call.1} parent=1 // pred_check_branch
      %52 = sbr.rel (0) target = $region21
    $region20: #{tpu_custom_call.1} parent=1 // pred_region
      _
    $region21: #{tpu_custom_call.1} parent=1 // pred_fallthru
      _
    // Predicated region
    $region22: #{tpu_custom_call.1} parent=1 // pred_check
      _
    $region23: #{tpu_custom_call.1} parent=1 // pred_check_branch
      %54 = sbr.rel (0) target = $region25
    $region24: #{tpu_custom_call.1} parent=1 // pred_region
      %55 = dma.done [#allocation4], 2048
    $region25: #{tpu_custom_call.1} parent=1 // pred_fallthru
      _
    // Predicated region
    $region26: #{tpu_custom_call.1} parent=1 // pred_check
      _
    $region27: #{tpu_custom_call.1} parent=1 // pred_check_branch
      %57 = sbr.rel (0) target = $region29
    $region28: #{tpu_custom_call.1} parent=1 // pred_region
      %58 = dma.done [#allocation7], 8192
    $region29: #{tpu_custom_call.1} parent=1 // pred_fallthru
      _
    // Predicated region
    $region30: #{tpu_custom_call.1} parent=1 // pred_check
      _
    $region31: #{tpu_custom_call.1} parent=1 // pred_check_branch
      %60 = sbr.rel (0) target = $region33
    $region32: #{tpu_custom_call.1} parent=1 // pred_region
      %61 = dma.done [#allocation7], 8192
    $region33: #{tpu_custom_call.1} parent=1 // pred_fallthru
      _
    %v62 = vld [vmem:[#allocation3] sm:$0xff]
    %v63 = vld [vmem:[#allocation3 + $0x8] sm:$0xff]
    %v64 = vld [vmem:[#allocation3 + $0x10] sm:$0xff]
    %v65 = vld [vmem:[#allocation3 + $0x18] sm:$0xff]
    %v66 = vld [vmem:[#allocation3 + $0x20] sm:$0xff]
    %v67 = vld [vmem:[#allocation3 + $0x28] sm:$0xff]
    %v68 = vld [vmem:[#allocation3 + $0x30] sm:$0xff]
    %v69 = vld [vmem:[#allocation3 + $0x38] sm:$0xff]
    %v70 = vld [vmem:[#allocation3 + $0x40] sm:$0xff]
    %v71 = vld [vmem:[#allocation3 + $0x48] sm:$0xff]
    %v72 = vld [vmem:[#allocation3 + $0x50] sm:$0xff]
    %v73 = vld [vmem:[#allocation3 + $0x58] sm:$0xff]
    %v74 = vld [vmem:[#allocation3 + $0x60] sm:$0xff]
    %v75 = vld [vmem:[#allocation3 + $0x68] sm:$0xff]
    %v76 = vld [vmem:[#allocation3 + $0x70] sm:$0xff]
    %v77 = vld [vmem:[#allocation3 + $0x78] sm:$0xff]
    %78 = vst [vmem:[#allocation2] sm:$0xff] 0.0
    %79 = vst [vmem:[#allocation2 + $0x8] sm:$0xff] 0.0
    %80 = vst [vmem:[#allocation2 + $0x10] sm:$0xff] 0.0
    %81 = vst [vmem:[#allocation2 + $0x18] sm:$0xff] 0.0
    %82 = vst [vmem:[#allocation2 + $0x20] sm:$0xff] 0.0
    %83 = vst [vmem:[#allocation2 + $0x28] sm:$0xff] 0.0
    %84 = vst [vmem:[#allocation2 + $0x30] sm:$0xff] 0.0
    %85 = vst [vmem:[#allocation2 + $0x38] sm:$0xff] 0.0
    %86 = vst [vmem:[#allocation2 + $0x40] sm:$0xff] 0.0
    %87 = vst [vmem:[#allocation2 + $0x48] sm:$0xff] 0.0
    %88 = vst [vmem:[#allocation2 + $0x50] sm:$0xff] 0.0
    %89 = vst [vmem:[#allocation2 + $0x58] sm:$0xff] 0.0
    %90 = vst [vmem:[#allocation2 + $0x60] sm:$0xff] 0.0
    %91 = vst [vmem:[#allocation2 + $0x68] sm:$0xff] 0.0
    %92 = vst [vmem:[#allocation2 + $0x70] sm:$0xff] 0.0
    %93 = vst [vmem:[#allocation2 + $0x78] sm:$0xff] 0.0
    %v94 = vld [vmem:[#allocation6] sm:$0xff]
    %v95 = vld [vmem:[#allocation6 + $0x8] sm:$0xff]
    %v96 = vld [vmem:[#allocation6 + $0x10] sm:$0xff]
    %v97 = vld [vmem:[#allocation6 + $0x18] sm:$0xff]
    %v98 = vld [vmem:[#allocation6 + $0x20] sm:$0xff]
    %v99 = vld [vmem:[#allocation6 + $0x28] sm:$0xff]
    %v100 = vld [vmem:[#allocation6 + $0x30] sm:$0xff]
    %v101 = vld [vmem:[#allocation6 + $0x38] sm:$0xff]
    %v102 = vld [vmem:[#allocation6 + $0x40] sm:$0xff]
    %v103 = vld [vmem:[#allocation6 + $0x48] sm:$0xff]
    %v104 = vld [vmem:[#allocation6 + $0x50] sm:$0xff]
    %v105 = vld [vmem:[#allocation6 + $0x58] sm:$0xff]
    %v106 = vld [vmem:[#allocation6 + $0x60] sm:$0xff]
    %v107 = vld [vmem:[#allocation6 + $0x68] sm:$0xff]
    %v108 = vld [vmem:[#allocation6 + $0x70] sm:$0xff]
    %v109 = vld [vmem:[#allocation6 + $0x78] sm:$0xff]
    %v110 = vld [vmem:[#allocation6 + $0x80] sm:$0xff]
    %v111 = vld [vmem:[#allocation6 + $0x88] sm:$0xff]
    %v112 = vld [vmem:[#allocation6 + $0x90] sm:$0xff]
    %v113 = vld [vmem:[#allocation6 + $0x98] sm:$0xff]
    %v114 = vld [vmem:[#allocation6 + $0xa0] sm:$0xff]
    %v115 = vld [vmem:[#allocation6 + $0xa8] sm:$0xff]
    %v116 = vld [vmem:[#allocation6 + $0xb0] sm:$0xff]
    %v117 = vld [vmem:[#allocation6 + $0xb8] sm:$0xff]
    %v118 = vld [vmem:[#allocation6 + $0xc0] sm:$0xff]
    %v119 = vld [vmem:[#allocation6 + $0xc8] sm:$0xff]
    %v120 = vld [vmem:[#allocation6 + $0xd0] sm:$0xff]
    %v121 = vld [vmem:[#allocation6 + $0xd8] sm:$0xff]
    %v122 = vld [vmem:[#allocation6 + $0xe0] sm:$0xff]
    %v123 = vld [vmem:[#allocation6 + $0xe8] sm:$0xff]
    %v124 = vld [vmem:[#allocation6 + $0xf0] sm:$0xff]
    %v125 = vld [vmem:[#allocation6 + $0xf8] sm:$0xff]
    %v126 = vld [vmem:[#allocation6 + $0x100] sm:$0xff]
    %v127 = vld [vmem:[#allocation6 + $0x108] sm:$0xff]
    %v128 = vld [vmem:[#allocation6 + $0x110] sm:$0xff]
    %v129 = vld [vmem:[#allocation6 + $0x118] sm:$0xff]
    %v130 = vld [vmem:[#allocation6 + $0x120] sm:$0xff]
    %v131 = vld [vmem:[#allocation6 + $0x128] sm:$0xff]
    %v132 = vld [vmem:[#allocation6 + $0x130] sm:$0xff]
    %v133 = vld [vmem:[#allocation6 + $0x138] sm:$0xff]
    %v134 = vld [vmem:[#allocation6 + $0x140] sm:$0xff]
    %v135 = vld [vmem:[#allocation6 + $0x148] sm:$0xff]
    %v136 = vld [vmem:[#allocation6 + $0x150] sm:$0xff]
    %v137 = vld [vmem:[#allocation6 + $0x158] sm:$0xff]
    %v138 = vld [vmem:[#allocation6 + $0x160] sm:$0xff]
    %v139 = vld [vmem:[#allocation6 + $0x168] sm:$0xff]
    %v140 = vld [vmem:[#allocation6 + $0x170] sm:$0xff]
    %v141 = vld [vmem:[#allocation6 + $0x178] sm:$0xff]
    %v142 = vld [vmem:[#allocation6 + $0x180] sm:$0xff]
    %v143 = vld [vmem:[#allocation6 + $0x188] sm:$0xff]
    %v144 = vld [vmem:[#allocation6 + $0x190] sm:$0xff]
    %v145 = vld [vmem:[#allocation6 + $0x198] sm:$0xff]
    %v146 = vld [vmem:[#allocation6 + $0x1a0] sm:$0xff]
    %v147 = vld [vmem:[#allocation6 + $0x1a8] sm:$0xff]
    %v148 = vld [vmem:[#allocation6 + $0x1b0] sm:$0xff]
    %v149 = vld [vmem:[#allocation6 + $0x1b8] sm:$0xff]
    %v150 = vld [vmem:[#allocation6 + $0x1c0] sm:$0xff]
    %v151 = vld [vmem:[#allocation6 + $0x1c8] sm:$0xff]
    %v152 = vld [vmem:[#allocation6 + $0x1d0] sm:$0xff]
    %v153 = vld [vmem:[#allocation6 + $0x1d8] sm:$0xff]
    %v154 = vld [vmem:[#allocation6 + $0x1e0] sm:$0xff]
    %v155 = vld [vmem:[#allocation6 + $0x1e8] sm:$0xff]
    %v156 = vld [vmem:[#allocation6 + $0x1f0] sm:$0xff]
    %v157 = vld [vmem:[#allocation6 + $0x1f8] sm:$0xff]
    %v158 = vld [vmem:[%s2] sm:$0xf]
    %v160 = vlaneseq
    %v161 = vshrl.u32 %v160, 7
    %v162 = vsub.s32 0, %v161
    %v163 = vrot.slane %v158, %v162
    %v164 = vlaneseq
    %v165 = vshrl.u32 %v164, 7
    %v166 = vsub.s32 1, %v165
    %v167 = vrot.slane %v158, %v166
    %v168 = vlaneseq
    %v169 = vshrl.u32 %v168, 7
    %v170 = vsub.s32 2, %v169
    %v171 = vrot.slane %v158, %v170
    %v172 = vlaneseq
    %v173 = vshrl.u32 %v172, 7
    %v174 = vsub.s32 3, %v173
    %v175 = vrot.slane %v158, %v174
    %180 = vmatprep.subr.mxu0 %v95
    %181 = vmatpush1.msra.mxu0 %v94
    %182 = vmatprep.subr.mxu0 %v99
    %183 = vmatpush1.msra.mxu0 %v98
    %184 = vmatprep.subr.mxu0 %v103
    %185 = vmatpush1.msra.mxu0 %v102
    %186 = vmatprep.subr.mxu0 %v107
    %187 = vmatpush1.msra.mxu0 %v106
    %188 = vmatprep.subr.mxu0 %v111
    %189 = vmatpush1.msra.mxu0 %v110
    %190 = vmatprep.subr.mxu0 %v115
    %191 = vmatpush1.msra.mxu0 %v114
    %192 = vmatprep.subr.mxu0 %v119
    %193 = vmatpush1.msra.mxu0 %v118
    %194 = vmatprep.subr.mxu0 %v123
    %195 = vmatpush1.msra.mxu0 %v122
    %196 = vmatprep.subr.mxu0 %v127
    %197 = vmatpush1.msra.mxu0 %v126
    %198 = vmatprep.subr.mxu0 %v131
    %199 = vmatpush1.msra.mxu0 %v130
    %200 = vmatprep.subr.mxu0 %v135
    %201 = vmatpush1.msra.mxu0 %v134
    %202 = vmatprep.subr.mxu0 %v139
    %203 = vmatpush1.msra.mxu0 %v138
    %204 = vmatprep.subr.mxu0 %v143
    %205 = vmatpush1.msra.mxu0 %v142
    %206 = vmatprep.subr.mxu0 %v147
    %207 = vmatpush1.msra.mxu0 %v146
    %208 = vmatprep.subr.mxu0 %v151
    %209 = vmatpush1.msra.mxu0 %v150
    %210 = vmatprep.subr.mxu0 %v155
    %211 = vmatpush1.msra.mxu0 %v154
    %212 = vmatprep.subr.mxu0 0.0
    %213 = vmatpush1.msra.mxu0 0.0
    %214 = vmatprep.subr.mxu0 0.0
    %215 = vmatpush1.msra.mxu0 0.0
    %216 = vmatprep.subr.mxu0 0.0
    %217 = vmatpush1.msra.mxu0 0.0
    %218 = vmatprep.subr.mxu0 0.0
    %219 = vmatpush1.msra.mxu0 0.0
    %220 = vmatprep.subr.mxu0 0.0
    %221 = vmatpush1.msra.mxu0 0.0
    %222 = vmatprep.subr.mxu0 0.0
    %223 = vmatpush1.msra.mxu0 0.0
    %224 = vmatprep.subr.mxu0 0.0
    %225 = vmatpush1.msra.mxu0 0.0
    %226 = vmatprep.subr.mxu0 0.0
    %227 = vmatpush1.msra.mxu0 0.0
    %228 = vmatprep.subr.mxu0 0.0
    %229 = vmatpush1.msra.mxu0 0.0
    %230 = vmatprep.subr.mxu0 0.0
    %231 = vmatpush1.msra.mxu0 0.0
    %232 = vmatprep.subr.mxu0 0.0
    %233 = vmatpush1.msra.mxu0 0.0
    %234 = vmatprep.subr.mxu0 0.0
    %235 = vmatpush1.msra.mxu0 0.0
    %236 = vmatprep.subr.mxu0 0.0
    %237 = vmatpush1.msra.mxu0 0.0
    %238 = vmatprep.subr.mxu0 0.0
    %239 = vmatpush1.msra.mxu0 0.0
    %240 = vmatprep.subr.mxu0 0.0
    %241 = vmatpush1.msra.mxu0 0.0
    %242 = vmatprep.subr.mxu0 0.0
    %243 = vmatpush1.msra.mxu0 0.0
    %244 = vmatprep.mubr.f32.mxu0 0.0
    %245 = vmatmul.mubr.f32.gmra.mrb[0].mxu0 %v62
    %v246 = vpop.f32.mrb[0].mxu0
    %v247 = vadd.f32 %v163, %v246
    %v248 = vpop.f32.mrb[0].mxu0
    %v249 = vadd.f32 %v167, %v248
    %250 = vmatprep.mubr.f32.mxu0 0.0
    %251 = vmatmul.mubr.f32.gmra.mrb[0].mxu0 %v63
    %v252 = vpop.f32.mrb[0].mxu0
    %v253 = vadd.f32 %v163, %v252
    %v254 = vpop.f32.mrb[0].mxu0
    %v255 = vadd.f32 %v167, %v254
    %256 = vmatprep.mubr.f32.mxu0 0.0
    %257 = vmatmul.mubr.f32.gmra.mrb[0].mxu0 %v64
    %v258 = vpop.f32.mrb[0].mxu0
    %v259 = vadd.f32 %v163, %v258
    %v260 = vpop.f32.mrb[0].mxu0
    %v261 = vadd.f32 %v167, %v260
    %262 = vmatprep.mubr.f32.mxu0 0.0
    %263 = vmatmul.mubr.f32.gmra.mrb[0].mxu0 %v65
    %v264 = vpop.f32.mrb[0].mxu0
    %v265 = vadd.f32 %v163, %v264
    %v266 = vpop.f32.mrb[0].mxu0
    %v267 = vadd.f32 %v167, %v266
    %268 = vmatprep.mubr.f32.mxu0 0.0
    %269 = vmatmul.mubr.f32.gmra.mrb[0].mxu0 %v66
    %v270 = vpop.f32.mrb[0].mxu0
    %v271 = vadd.f32 %v163, %v270
    %v272 = vpop.f32.mrb[0].mxu0
    %v273 = vadd.f32 %v167, %v272
    %274 = vmatprep.mubr.f32.mxu0 0.0
    %275 = vmatmul.mubr.f32.gmra.mrb[0].mxu0 %v67
    %v276 = vpop.f32.mrb[0].mxu0
    %v277 = vadd.f32 %v163, %v276
    %v278 = vpop.f32.mrb[0].mxu0
    %v279 = vadd.f32 %v167, %v278
    %280 = vmatprep.mubr.f32.mxu0 0.0
    %281 = vmatmul.mubr.f32.gmra.mrb[0].mxu0 %v68
    %v282 = vpop.f32.mrb[0].mxu0
    %v283 = vadd.f32 %v163, %v282
    %v284 = vpop.f32.mrb[0].mxu0
    %v285 = vadd.f32 %v167, %v284
    %286 = vmatprep.mubr.f32.mxu0 0.0
    %287 = vmatmul.mubr.f32.gmra.mrb[0].mxu0 %v69
    %v288 = vpop.f32.mrb[0].mxu0
    %v289 = vadd.f32 %v163, %v288
    %v290 = vpop.f32.mrb[0].mxu0
    %v291 = vadd.f32 %v167, %v290
    %292 = vmatprep.mubr.f32.mxu0 0.0
    %293 = vmatmul.mubr.f32.gmra.mrb[0].mxu0 %v70
    %v294 = vpop.f32.mrb[0].mxu0
    %v295 = vadd.f32 %v163, %v294
    %v296 = vpop.f32.mrb[0].mxu0
    %v297 = vadd.f32 %v167, %v296
    %298 = vmatprep.mubr.f32.mxu0 0.0
    %299 = vmatmul.mubr.f32.gmra.mrb[0].mxu0 %v71
    %v300 = vpop.f32.mrb[0].mxu0
    %v301 = vadd.f32 %v163, %v300
    %v302 = vpop.f32.mrb[0].mxu0
    %v303 = vadd.f32 %v167, %v302
    %304 = vmatprep.mubr.f32.mxu0 0.0
    %305 = vmatmul.mubr.f32.gmra.mrb[0].mxu0 %v72
    %v306 = vpop.f32.mrb[0].mxu0
    %v307 = vadd.f32 %v163, %v306
    %v308 = vpop.f32.mrb[0].mxu0
    %v309 = vadd.f32 %v167, %v308
    %310 = vmatprep.mubr.f32.mxu0 0.0
    %311 = vmatmul.mubr.f32.gmra.mrb[0].mxu0 %v73
    %v312 = vpop.f32.mrb[0].mxu0
    %v313 = vadd.f32 %v163, %v312
    %v314 = vpop.f32.mrb[0].mxu0
    %v315 = vadd.f32 %v167, %v314
    %316 = vmatprep.mubr.f32.mxu0 0.0
    %317 = vmatmul.mubr.f32.gmra.mrb[0].mxu0 %v74
    %v318 = vpop.f32.mrb[0].mxu0
    %v319 = vadd.f32 %v163, %v318
    %v320 = vpop.f32.mrb[0].mxu0
    %v321 = vadd.f32 %v167, %v320
    %322 = vmatprep.mubr.f32.mxu0 0.0
    %323 = vmatmul.mubr.f32.gmra.mrb[0].mxu0 %v75
    %v324 = vpop.f32.mrb[0].mxu0
    %v325 = vadd.f32 %v163, %v324
    %v326 = vpop.f32.mrb[0].mxu0
    %v327 = vadd.f32 %v167, %v326
    %328 = vmatprep.mubr.f32.mxu0 0.0
    %329 = vmatmul.mubr.f32.gmra.mrb[0].mxu0 %v76
    %v330 = vpop.f32.mrb[0].mxu0
    %v331 = vadd.f32 %v163, %v330
    %v332 = vpop.f32.mrb[0].mxu0
    %v333 = vadd.f32 %v167, %v332
    %334 = vmatprep.mubr.f32.mxu0 0.0
    %335 = vmatmul.mubr.f32.gmra.mrb[0].mxu0 %v77
    %v336 = vpop.f32.mrb[0].mxu0
    %v337 = vadd.f32 %v163, %v336
    %v338 = vpop.f32.mrb[0].mxu0
    %v339 = vadd.f32 %v167, %v338
    %340 = vdwg.mxu0
    %341 = vmatprep.subr.mxu0 %v97
    %342 = vmatpush1.msra.mxu0 %v96
    %343 = vmatprep.subr.mxu0 %v101
    %344 = vmatpush1.msra.mxu0 %v100
    %345 = vmatprep.subr.mxu0 %v105
    %346 = vmatpush1.msra.mxu0 %v104
    %347 = vmatprep.subr.mxu0 %v109
    %348 = vmatpush1.msra.mxu0 %v108
    %349 = vmatprep.subr.mxu0 %v113
    %350 = vmatpush1.msra.mxu0 %v112
    %351 = vmatprep.subr.mxu0 %v117
    %352 = vmatpush1.msra.mxu0 %v116
    %353 = vmatprep.subr.mxu0 %v121
    %354 = vmatpush1.msra.mxu0 %v120
    %355 = vmatprep.subr.mxu0 %v125
    %356 = vmatpush1.msra.mxu0 %v124
    %357 = vmatprep.subr.mxu0 %v129
    %358 = vmatpush1.msra.mxu0 %v128
    %359 = vmatprep.subr.mxu0 %v133
    %360 = vmatpush1.msra.mxu0 %v132
    %361 = vmatprep.subr.mxu0 %v137
    %362 = vmatpush1.msra.mxu0 %v136
    %363 = vmatprep.subr.mxu0 %v141
    %364 = vmatpush1.msra.mxu0 %v140
    %365 = vmatprep.subr.mxu0 %v145
    %366 = vmatpush1.msra.mxu0 %v144
    %367 = vmatprep.subr.mxu0 %v149
    %368 = vmatpush1.msra.mxu0 %v148
    %369 = vmatprep.subr.mxu0 %v153
    %370 = vmatpush1.msra.mxu0 %v152
    %371 = vmatprep.subr.mxu0 %v157
    %372 = vmatpush1.msra.mxu0 %v156
    %373 = vmatprep.subr.mxu0 0.0
    %374 = vmatpush1.msra.mxu0 0.0
    %375 = vmatprep.subr.mxu0 0.0
    %376 = vmatpush1.msra.mxu0 0.0
    %377 = vmatprep.subr.mxu0 0.0
    %378 = vmatpush1.msra.mxu0 0.0
    %379 = vmatprep.subr.mxu0 0.0
    %380 = vmatpush1.msra.mxu0 0.0
    %381 = vmatprep.subr.mxu0 0.0
    %382 = vmatpush1.msra.mxu0 0.0
    %383 = vmatprep.subr.mxu0 0.0
    %384 = vmatpush1.msra.mxu0 0.0
    %385 = vmatprep.subr.mxu0 0.0
    %386 = vmatpush1.msra.mxu0 0.0
    %387 = vmatprep.subr.mxu0 0.0
    %388 = vmatpush1.msra.mxu0 0.0
    %389 = vmatprep.subr.mxu0 0.0
    %390 = vmatpush1.msra.mxu0 0.0
    %391 = vmatprep.subr.mxu0 0.0
    %392 = vmatpush1.msra.mxu0 0.0
    %393 = vmatprep.subr.mxu0 0.0
    %394 = vmatpush1.msra.mxu0 0.0
    %395 = vmatprep.subr.mxu0 0.0
    %396 = vmatpush1.msra.mxu0 0.0
    %397 = vmatprep.subr.mxu0 0.0
    %398 = vmatpush1.msra.mxu0 0.0
    %399 = vmatprep.subr.mxu0 0.0
    %400 = vmatpush1.msra.mxu0 0.0
    %401 = vmatprep.subr.mxu0 0.0
    %402 = vmatpush1.msra.mxu0 0.0
    %403 = vmatprep.subr.mxu0 0.0
    %404 = vmatpush1.msra.mxu0 0.0
    %405 = vmatprep.mubr.f32.mxu0 0.0
    %406 = vmatmul.mubr.f32.gmra.mrb[0].mxu0 %v62
    %v407 = vpop.f32.mrb[0].mxu0
    %v408 = vadd.f32 %v171, %v407
    %v409 = vpop.f32.mrb[0].mxu0
    %v410 = vadd.f32 %v175, %v409
    %411 = vmatprep.mubr.f32.mxu0 0.0
    %412 = vmatmul.mubr.f32.gmra.mrb[0].mxu0 %v63
    %v413 = vpop.f32.mrb[0].mxu0
    %v414 = vadd.f32 %v171, %v413
    %v415 = vpop.f32.mrb[0].mxu0
    %v416 = vadd.f32 %v175, %v415
    %417 = vmatprep.mubr.f32.mxu0 0.0
    %418 = vmatmul.mubr.f32.gmra.mrb[0].mxu0 %v64
    %v419 = vpop.f32.mrb[0].mxu0
    %v420 = vadd.f32 %v171, %v419
    %v421 = vpop.f32.mrb[0].mxu0
    %v422 = vadd.f32 %v175, %v421
    %423 = vmatprep.mubr.f32.mxu0 0.0
    %424 = vmatmul.mubr.f32.gmra.mrb[0].mxu0 %v65
    %v425 = vpop.f32.mrb[0].mxu0
    %v426 = vadd.f32 %v171, %v425
    %v427 = vpop.f32.mrb[0].mxu0
    %v428 = vadd.f32 %v175, %v427
    %429 = vmatprep.mubr.f32.mxu0 0.0
    %430 = vmatmul.mubr.f32.gmra.mrb[0].mxu0 %v66
    %v431 = vpop.f32.mrb[0].mxu0
    %v432 = vadd.f32 %v171, %v431
    %v433 = vpop.f32.mrb[0].mxu0
    %v434 = vadd.f32 %v175, %v433
    %435 = vmatprep.mubr.f32.mxu0 0.0
    %436 = vmatmul.mubr.f32.gmra.mrb[0].mxu0 %v67
    %v437 = vpop.f32.mrb[0].mxu0
    %v438 = vadd.f32 %v171, %v437
    %v439 = vpop.f32.mrb[0].mxu0
    %v440 = vadd.f32 %v175, %v439
    %441 = vmatprep.mubr.f32.mxu0 0.0
    %442 = vmatmul.mubr.f32.gmra.mrb[0].mxu0 %v68
    %v443 = vpop.f32.mrb[0].mxu0
    %v444 = vadd.f32 %v171, %v443
    %v445 = vpop.f32.mrb[0].mxu0
    %v446 = vadd.f32 %v175, %v445
    %447 = vmatprep.mubr.f32.mxu0 0.0
    %448 = vmatmul.mubr.f32.gmra.mrb[0].mxu0 %v69
    %v449 = vpop.f32.mrb[0].mxu0
    %v450 = vadd.f32 %v171, %v449
    %v451 = vpop.f32.mrb[0].mxu0
    %v452 = vadd.f32 %v175, %v451
    %453 = vmatprep.mubr.f32.mxu0 0.0
    %454 = vmatmul.mubr.f32.gmra.mrb[0].mxu0 %v70
    %v455 = vpop.f32.mrb[0].mxu0
    %v456 = vadd.f32 %v171, %v455
    %v457 = vpop.f32.mrb[0].mxu0
    %v458 = vadd.f32 %v175, %v457
    %459 = vmatprep.mubr.f32.mxu0 0.0
    %460 = vmatmul.mubr.f32.gmra.mrb[0].mxu0 %v71
    %v461 = vpop.f32.mrb[0].mxu0
    %v462 = vadd.f32 %v171, %v461
    %v463 = vpop.f32.mrb[0].mxu0
    %v464 = vadd.f32 %v175, %v463
    %465 = vmatprep.mubr.f32.mxu0 0.0
    %466 = vmatmul.mubr.f32.gmra.mrb[0].mxu0 %v72
    %v467 = vpop.f32.mrb[0].mxu0
    %v468 = vadd.f32 %v171, %v467
    %v469 = vpop.f32.mrb[0].mxu0
    %v470 = vadd.f32 %v175, %v469
    %471 = vmatprep.mubr.f32.mxu0 0.0
    %472 = vmatmul.mubr.f32.gmra.mrb[0].mxu0 %v73
    %v473 = vpop.f32.mrb[0].mxu0
    %v474 = vadd.f32 %v171, %v473
    %v475 = vpop.f32.mrb[0].mxu0
    %v476 = vadd.f32 %v175, %v475
    %477 = vmatprep.mubr.f32.mxu0 0.0
    %478 = vmatmul.mubr.f32.gmra.mrb[0].mxu0 %v74
    %v479 = vpop.f32.mrb[0].mxu0
    %v480 = vadd.f32 %v171, %v479
    %v481 = vpop.f32.mrb[0].mxu0
    %v482 = vadd.f32 %v175, %v481
    %483 = vmatprep.mubr.f32.mxu0 0.0
    %484 = vmatmul.mubr.f32.gmra.mrb[0].mxu0 %v75
    %v485 = vpop.f32.mrb[0].mxu0
    %v486 = vadd.f32 %v171, %v485
    %v487 = vpop.f32.mrb[0].mxu0
    %v488 = vadd.f32 %v175, %v487
    %489 = vmatprep.mubr.f32.mxu0 0.0
    %490 = vmatmul.mubr.f32.gmra.mrb[0].mxu0 %v76
    %v491 = vpop.f32.mrb[0].mxu0
    %v492 = vadd.f32 %v171, %v491
    %v493 = vpop.f32.mrb[0].mxu0
    %v494 = vadd.f32 %v175, %v493
    %495 = vmatprep.mubr.f32.mxu0 0.0
    %496 = vmatmul.mubr.f32.gmra.mrb[0].mxu0 %v77
    %v497 = vpop.f32.mrb[0].mxu0
    %v498 = vadd.f32 %v171, %v497
    %v499 = vpop.f32.mrb[0].mxu0
    %v500 = vadd.f32 %v175, %v499
    %501 = vdwg.mxu0
    %v502 = vmul.f32 %v247, 0.5
    %v503 = vmul.f32 %v249, 0.5
    %v504 = vmul.f32 %v408, 0.5
    %v505 = vmul.f32 %v410, 0.5
    %v506 = vmul.f32 %v253, 0.5
    %v507 = vmul.f32 %v255, 0.5
    %v508 = vmul.f32 %v414, 0.5
    %v509 = vmul.f32 %v416, 0.5
    %v510 = vmul.f32 %v259, 0.5
    %v511 = vmul.f32 %v261, 0.5
    %v512 = vmul.f32 %v420, 0.5
    %v513 = vmul.f32 %v422, 0.5
    %v514 = vmul.f32 %v265, 0.5
    %v515 = vmul.f32 %v267, 0.5
    %v516 = vmul.f32 %v426, 0.5
    %v517 = vmul.f32 %v428, 0.5
    %v518 = vmul.f32 %v271, 0.5
    %v519 = vmul.f32 %v273, 0.5
    %v520 = vmul.f32 %v432, 0.5
    %v521 = vmul.f32 %v434, 0.5
    %v522 = vmul.f32 %v277, 0.5
    %v523 = vmul.f32 %v279, 0.5
    %v524 = vmul.f32 %v438, 0.5
    %v525 = vmul.f32 %v440, 0.5
    %v526 = vmul.f32 %v283, 0.5
    %v527 = vmul.f32 %v285, 0.5
    %v528 = vmul.f32 %v444, 0.5
    %v529 = vmul.f32 %v446, 0.5
    %v530 = vmul.f32 %v289, 0.5
    %v531 = vmul.f32 %v291, 0.5
    %v532 = vmul.f32 %v450, 0.5
    %v533 = vmul.f32 %v452, 0.5
    %v534 = vmul.f32 %v295, 0.5
    %v535 = vmul.f32 %v297, 0.5
    %v536 = vmul.f32 %v456, 0.5
    %v537 = vmul.f32 %v458, 0.5
    %v538 = vmul.f32 %v301, 0.5
    %v539 = vmul.f32 %v303, 0.5
    %v540 = vmul.f32 %v462, 0.5
    %v541 = vmul.f32 %v464, 0.5
    %v542 = vmul.f32 %v307, 0.5
    %v543 = vmul.f32 %v309, 0.5
    %v544 = vmul.f32 %v468, 0.5
    %v545 = vmul.f32 %v470, 0.5
    %v546 = vmul.f32 %v313, 0.5
    %v547 = vmul.f32 %v315, 0.5
    %v548 = vmul.f32 %v474, 0.5
    %v549 = vmul.f32 %v476, 0.5
    %v550 = vmul.f32 %v319, 0.5
    %v551 = vmul.f32 %v321, 0.5
    %v552 = vmul.f32 %v480, 0.5
    %v553 = vmul.f32 %v482, 0.5
    %v554 = vmul.f32 %v325, 0.5
    %v555 = vmul.f32 %v327, 0.5
    %v556 = vmul.f32 %v486, 0.5
    %v557 = vmul.f32 %v488, 0.5
    %v558 = vmul.f32 %v331, 0.5
    %v559 = vmul.f32 %v333, 0.5
    %v560 = vmul.f32 %v492, 0.5
    %v561 = vmul.f32 %v494, 0.5
    %v562 = vmul.f32 %v337, 0.5
    %v563 = vmul.f32 %v339, 0.5
    %v564 = vmul.f32 %v498, 0.5
    %v565 = vmul.f32 %v500, 0.5
    %v566 = vmul.f32 %v247, 0.70710677
    %v567 = vmul.f32 %v249, 0.70710677
    %v568 = vmul.f32 %v408, 0.70710677
    %v569 = vmul.f32 %v410, 0.70710677
    %v570 = vmul.f32 %v253, 0.70710677
    %v571 = vmul.f32 %v255, 0.70710677
    %v572 = vmul.f32 %v414, 0.70710677
    %v573 = vmul.f32 %v416, 0.70710677
    %v574 = vmul.f32 %v259, 0.70710677
    %v575 = vmul.f32 %v261, 0.70710677
    %v576 = vmul.f32 %v420, 0.70710677
    %v577 = vmul.f32 %v422, 0.70710677
    %v578 = vmul.f32 %v265, 0.70710677
    %v579 = vmul.f32 %v267, 0.70710677
    %v580 = vmul.f32 %v426, 0.70710677
    %v581 = vmul.f32 %v428, 0.70710677
    %v582 = vmul.f32 %v271, 0.70710677
    %v583 = vmul.f32 %v273, 0.70710677
    %v584 = vmul.f32 %v432, 0.70710677
    %v585 = vmul.f32 %v434, 0.70710677
    %v586 = vmul.f32 %v277, 0.70710677
    %v587 = vmul.f32 %v279, 0.70710677
    %v588 = vmul.f32 %v438, 0.70710677
    %v589 = vmul.f32 %v440, 0.70710677
    %v590 = vmul.f32 %v283, 0.70710677
    %v591 = vmul.f32 %v285, 0.70710677
    %v592 = vmul.f32 %v444, 0.70710677
    %v593 = vmul.f32 %v446, 0.70710677
    %v594 = vmul.f32 %v289, 0.70710677
    %v595 = vmul.f32 %v291, 0.70710677
    %v596 = vmul.f32 %v450, 0.70710677
    %v597 = vmul.f32 %v452, 0.70710677
    %v598 = vmul.f32 %v295, 0.70710677
    %v599 = vmul.f32 %v297, 0.70710677
    %v600 = vmul.f32 %v456, 0.70710677
    %v601 = vmul.f32 %v458, 0.70710677
    %v602 = vmul.f32 %v301, 0.70710677
    %v603 = vmul.f32 %v303, 0.70710677
    %v604 = vmul.f32 %v462, 0.70710677
    %v605 = vmul.f32 %v464, 0.70710677
    %v606 = vmul.f32 %v307, 0.70710677
    %v607 = vmul.f32 %v309, 0.70710677
    %v608 = vmul.f32 %v468, 0.70710677
    %v609 = vmul.f32 %v470, 0.70710677
    %v610 = vmul.f32 %v313, 0.70710677
    %v611 = vmul.f32 %v315, 0.70710677
    %v612 = vmul.f32 %v474, 0.70710677
    %v613 = vmul.f32 %v476, 0.70710677
    %v614 = vmul.f32 %v319, 0.70710677
    %v615 = vmul.f32 %v321, 0.70710677
    %v616 = vmul.f32 %v480, 0.70710677
    %v617 = vmul.f32 %v482, 0.70710677
    %v618 = vmul.f32 %v325, 0.70710677
    %v619 = vmul.f32 %v327, 0.70710677
    %v620 = vmul.f32 %v486, 0.70710677
    %v621 = vmul.f32 %v488, 0.70710677
    %v622 = vmul.f32 %v331, 0.70710677
    %v623 = vmul.f32 %v333, 0.70710677
    %v624 = vmul.f32 %v492, 0.70710677
    %v625 = vmul.f32 %v494, 0.70710677
    %v626 = vmul.f32 %v337, 0.70710677
    %v627 = vmul.f32 %v339, 0.70710677
    %v628 = vmul.f32 %v498, 0.70710677
    %v629 = vmul.f32 %v500, 0.70710677
    %v630 = verf.f32.pop %v566
    %v631 = verf.f32.pop %v567
    %v632 = verf.f32.pop %v568
    %v633 = verf.f32.pop %v569
    %v634 = verf.f32.pop %v570
    %v635 = verf.f32.pop %v571
    %v636 = verf.f32.pop %v572
    %v637 = verf.f32.pop %v573
    %v638 = verf.f32.pop %v574
    %v639 = verf.f32.pop %v575
    %v640 = verf.f32.pop %v576
    %v641 = verf.f32.pop %v577
    %v642 = verf.f32.pop %v578
    %v643 = verf.f32.pop %v579
    %v644 = verf.f32.pop %v580
    %v645 = verf.f32.pop %v581
    %v646 = verf.f32.pop %v582
    %v647 = verf.f32.pop %v583
    %v648 = verf.f32.pop %v584
    %v649 = verf.f32.pop %v585
    %v650 = verf.f32.pop %v586
    %v651 = verf.f32.pop %v587
    %v652 = verf.f32.pop %v588
    %v653 = verf.f32.pop %v589
    %v654 = verf.f32.pop %v590
    %v655 = verf.f32.pop %v591
    %v656 = verf.f32.pop %v592
    %v657 = verf.f32.pop %v593
    %v658 = verf.f32.pop %v594
    %v659 = verf.f32.pop %v595
    %v660 = verf.f32.pop %v596
    %v661 = verf.f32.pop %v597
    %v662 = verf.f32.pop %v598
    %v663 = verf.f32.pop %v599
    %v664 = verf.f32.pop %v600
    %v665 = verf.f32.pop %v601
    %v666 = verf.f32.pop %v602
    %v667 = verf.f32.pop %v603
    %v668 = verf.f32.pop %v604
    %v669 = verf.f32.pop %v605
    %v670 = verf.f32.pop %v606
    %v671 = verf.f32.pop %v607
    %v672 = verf.f32.pop %v608
    %v673 = verf.f32.pop %v609
    %v674 = verf.f32.pop %v610
    %v675 = verf.f32.pop %v611
    %v676 = verf.f32.pop %v612
    %v677 = verf.f32.pop %v613
    %v678 = verf.f32.pop %v614
    %v679 = verf.f32.pop %v615
    %v680 = verf.f32.pop %v616
    %v681 = verf.f32.pop %v617
    %v682 = verf.f32.pop %v618
    %v683 = verf.f32.pop %v619
    %v684 = verf.f32.pop %v620
    %v685 = verf.f32.pop %v621
    %v686 = verf.f32.pop %v622
    %v687 = verf.f32.pop %v623
    %v688 = verf.f32.pop %v624
    %v689 = verf.f32.pop %v625
    %v690 = verf.f32.pop %v626
    %v691 = verf.f32.pop %v627
    %v692 = verf.f32.pop %v628
    %v693 = verf.f32.pop %v629
    %v694 = vadd.f32 %v630, 1.0
    %v695 = vadd.f32 %v631, 1.0
    %v696 = vadd.f32 %v632, 1.0
    %v697 = vadd.f32 %v633, 1.0
    %v698 = vadd.f32 %v634, 1.0
    %v699 = vadd.f32 %v635, 1.0
    %v700 = vadd.f32 %v636, 1.0
    %v701 = vadd.f32 %v637, 1.0
    %v702 = vadd.f32 %v638, 1.0
    %v703 = vadd.f32 %v639, 1.0
    %v704 = vadd.f32 %v640, 1.0
    %v705 = vadd.f32 %v641, 1.0
    %v706 = vadd.f32 %v642, 1.0
    %v707 = vadd.f32 %v643, 1.0
    %v708 = vadd.f32 %v644, 1.0
    %v709 = vadd.f32 %v645, 1.0
    %v710 = vadd.f32 %v646, 1.0
    %v711 = vadd.f32 %v647, 1.0
    %v712 = vadd.f32 %v648, 1.0
    %v713 = vadd.f32 %v649, 1.0
    %v714 = vadd.f32 %v650, 1.0
    %v715 = vadd.f32 %v651, 1.0
    %v716 = vadd.f32 %v652, 1.0
    %v717 = vadd.f32 %v653, 1.0
    %v718 = vadd.f32 %v654, 1.0
    %v719 = vadd.f32 %v655, 1.0
    %v720 = vadd.f32 %v656, 1.0
    %v721 = vadd.f32 %v657, 1.0
    %v722 = vadd.f32 %v658, 1.0
    %v723 = vadd.f32 %v659, 1.0
    %v724 = vadd.f32 %v660, 1.0
    %v725 = vadd.f32 %v661, 1.0
    %v726 = vadd.f32 %v662, 1.0
    %v727 = vadd.f32 %v663, 1.0
    %v728 = vadd.f32 %v664, 1.0
    %v729 = vadd.f32 %v665, 1.0
    %v730 = vadd.f32 %v666, 1.0
    %v731 = vadd.f32 %v667, 1.0
    %v732 = vadd.f32 %v668, 1.0
    %v733 = vadd.f32 %v669, 1.0
    %v734 = vadd.f32 %v670, 1.0
    %v735 = vadd.f32 %v671, 1.0
    %v736 = vadd.f32 %v672, 1.0
    %v737 = vadd.f32 %v673, 1.0
    %v738 = vadd.f32 %v674, 1.0
    %v739 = vadd.f32 %v675, 1.0
    %v740 = vadd.f32 %v676, 1.0
    %v741 = vadd.f32 %v677, 1.0
    %v742 = vadd.f32 %v678, 1.0
    %v743 = vadd.f32 %v679, 1.0
    %v744 = vadd.f32 %v680, 1.0
    %v745 = vadd.f32 %v681, 1.0
    %v746 = vadd.f32 %v682, 1.0
    %v747 = vadd.f32 %v683, 1.0
    %v748 = vadd.f32 %v684, 1.0
    %v749 = vadd.f32 %v685, 1.0
    %v750 = vadd.f32 %v686, 1.0
    %v751 = vadd.f32 %v687, 1.0
    %v752 = vadd.f32 %v688, 1.0
    %v753 = vadd.f32 %v689, 1.0
    %v754 = vadd.f32 %v690, 1.0
    %v755 = vadd.f32 %v691, 1.0
    %v756 = vadd.f32 %v692, 1.0
    %v757 = vadd.f32 %v693, 1.0
    %v758 = vmul.f32 %v502, %v694
    %v759 = vmul.f32 %v503, %v695
    %v760 = vmul.f32 %v504, %v696
    %v761 = vmul.f32 %v505, %v697
    %v762 = vmul.f32 %v506, %v698
    %v763 = vmul.f32 %v507, %v699
    %v764 = vmul.f32 %v508, %v700
    %v765 = vmul.f32 %v509, %v701
    %v766 = vmul.f32 %v510, %v702
    %v767 = vmul.f32 %v511, %v703
    %v768 = vmul.f32 %v512, %v704
    %v769 = vmul.f32 %v513, %v705
    %v770 = vmul.f32 %v514, %v706
    %v771 = vmul.f32 %v515, %v707
    %v772 = vmul.f32 %v516, %v708
    %v773 = vmul.f32 %v517, %v709
    %v774 = vmul.f32 %v518, %v710
    %v775 = vmul.f32 %v519, %v711
    %v776 = vmul.f32 %v520, %v712
    %v777 = vmul.f32 %v521, %v713
    %v778 = vmul.f32 %v522, %v714
    %v779 = vmul.f32 %v523, %v715
    %v780 = vmul.f32 %v524, %v716
    %v781 = vmul.f32 %v525, %v717
    %v782 = vmul.f32 %v526, %v718
    %v783 = vmul.f32 %v527, %v719
    %v784 = vmul.f32 %v528, %v720
    %v785 = vmul.f32 %v529, %v721
    %v786 = vmul.f32 %v530, %v722
    %v787 = vmul.f32 %v531, %v723
    %v788 = vmul.f32 %v532, %v724
    %v789 = vmul.f32 %v533, %v725
    %v790 = vmul.f32 %v534, %v726
    %v791 = vmul.f32 %v535, %v727
    %v792 = vmul.f32 %v536, %v728
    %v793 = vmul.f32 %v537, %v729
    %v794 = vmul.f32 %v538, %v730
    %v795 = vmul.f32 %v539, %v731
    %v796 = vmul.f32 %v540, %v732
    %v797 = vmul.f32 %v541, %v733
    %v798 = vmul.f32 %v542, %v734
    %v799 = vmul.f32 %v543, %v735
    %v800 = vmul.f32 %v544, %v736
    %v801 = vmul.f32 %v545, %v737
    %v802 = vmul.f32 %v546, %v738
    %v803 = vmul.f32 %v547, %v739
    %v804 = vmul.f32 %v548, %v740
    %v805 = vmul.f32 %v549, %v741
    %v806 = vmul.f32 %v550, %v742
    %v807 = vmul.f32 %v551, %v743
    %v808 = vmul.f32 %v552, %v744
    %v809 = vmul.f32 %v553, %v745
    %v810 = vmul.f32 %v554, %v746
    %v811 = vmul.f32 %v555, %v747
    %v812 = vmul.f32 %v556, %v748
    %v813 = vmul.f32 %v557, %v749
    %v814 = vmul.f32 %v558, %v750
    %v815 = vmul.f32 %v559, %v751
    %v816 = vmul.f32 %v560, %v752
    %v817 = vmul.f32 %v561, %v753
    %v818 = vmul.f32 %v562, %v754
    %v819 = vmul.f32 %v563, %v755
    %v820 = vmul.f32 %v564, %v756
    %v821 = vmul.f32 %v565, %v757
    %v822 = vld [vmem:[#allocation2] sm:$0xff]
    %v823 = vld [vmem:[#allocation2 + $0x8] sm:$0xff]
    %v824 = vld [vmem:[#allocation2 + $0x10] sm:$0xff]
    %v825 = vld [vmem:[#allocation2 + $0x18] sm:$0xff]
    %v826 = vld [vmem:[#allocation2 + $0x20] sm:$0xff]
    %v827 = vld [vmem:[#allocation2 + $0x28] sm:$0xff]
    %v828 = vld [vmem:[#allocation2 + $0x30] sm:$0xff]
    %v829 = vld [vmem:[#allocation2 + $0x38] sm:$0xff]
    %v830 = vld [vmem:[#allocation2 + $0x40] sm:$0xff]
    %v831 = vld [vmem:[#allocation2 + $0x48] sm:$0xff]
    %v832 = vld [vmem:[#allocation2 + $0x50] sm:$0xff]
    %v833 = vld [vmem:[#allocation2 + $0x58] sm:$0xff]
    %v834 = vld [vmem:[#allocation2 + $0x60] sm:$0xff]
    %v835 = vld [vmem:[#allocation2 + $0x68] sm:$0xff]
    %v836 = vld [vmem:[#allocation2 + $0x70] sm:$0xff]
    %v837 = vld [vmem:[#allocation2 + $0x78] sm:$0xff]
    %v838 = vld [vmem:[#allocation8] sm:$0xff]
    %v839 = vld [vmem:[#allocation8 + $0x8] sm:$0xff]
    %v840 = vld [vmem:[#allocation8 + $0x10] sm:$0xff]
    %v841 = vld [vmem:[#allocation8 + $0x18] sm:$0xff]
    %v842 = vld [vmem:[#allocation8 + $0x20] sm:$0xff]
    %v843 = vld [vmem:[#allocation8 + $0x28] sm:$0xff]
    %v844 = vld [vmem:[#allocation8 + $0x30] sm:$0xff]
    %v845 = vld [vmem:[#allocation8 + $0x38] sm:$0xff]
    %v846 = vld [vmem:[#allocation8 + $0x40] sm:$0xff]
    %v847 = vld [vmem:[#allocation8 + $0x48] sm:$0xff]
    %v848 = vld [vmem:[#allocation8 + $0x50] sm:$0xff]
    %v849 = vld [vmem:[#allocation8 + $0x58] sm:$0xff]
    %v850 = vld [vmem:[#allocation8 + $0x60] sm:$0xff]
    %v851 = vld [vmem:[#allocation8 + $0x68] sm:$0xff]
    %v852 = vld [vmem:[#allocation8 + $0x70] sm:$0xff]
    %v853 = vld [vmem:[#allocation8 + $0x78] sm:$0xff]
    %v854 = vld [vmem:[#allocation8 + $0x80] sm:$0xff]
    %v855 = vld [vmem:[#allocation8 + $0x88] sm:$0xff]
    %v856 = vld [vmem:[#allocation8 + $0x90] sm:$0xff]
    %v857 = vld [vmem:[#allocation8 + $0x98] sm:$0xff]
    %v858 = vld [vmem:[#allocation8 + $0xa0] sm:$0xff]
    %v859 = vld [vmem:[#allocation8 + $0xa8] sm:$0xff]
    %v860 = vld [vmem:[#allocation8 + $0xb0] sm:$0xff]
    %v861 = vld [vmem:[#allocation8 + $0xb8] sm:$0xff]
    %v862 = vld [vmem:[#allocation8 + $0xc0] sm:$0xff]
    %v863 = vld [vmem:[#allocation8 + $0xc8] sm:$0xff]
    %v864 = vld [vmem:[#allocation8 + $0xd0] sm:$0xff]
    %v865 = vld [vmem:[#allocation8 + $0xd8] sm:$0xff]
    %v866 = vld [vmem:[#allocation8 + $0xe0] sm:$0xff]
    %v867 = vld [vmem:[#allocation8 + $0xe8] sm:$0xff]
    %v868 = vld [vmem:[#allocation8 + $0xf0] sm:$0xff]
    %v869 = vld [vmem:[#allocation8 + $0xf8] sm:$0xff]
    %v870 = vld [vmem:[#allocation8 + $0x100] sm:$0xff]
    %v871 = vld [vmem:[#allocation8 + $0x108] sm:$0xff]
    %v872 = vld [vmem:[#allocation8 + $0x110] sm:$0xff]
    %v873 = vld [vmem:[#allocation8 + $0x118] sm:$0xff]
    %v874 = vld [vmem:[#allocation8 + $0x120] sm:$0xff]
    %v875 = vld [vmem:[#allocation8 + $0x128] sm:$0xff]
    %v876 = vld [vmem:[#allocation8 + $0x130] sm:$0xff]
    %v877 = vld [vmem:[#allocation8 + $0x138] sm:$0xff]
    %v878 = vld [vmem:[#allocation8 + $0x140] sm:$0xff]
    %v879 = vld [vmem:[#allocation8 + $0x148] sm:$0xff]
    %v880 = vld [vmem:[#allocation8 + $0x150] sm:$0xff]
    %v881 = vld [vmem:[#allocation8 + $0x158] sm:$0xff]
    %v882 = vld [vmem:[#allocation8 + $0x160] sm:$0xff]
    %v883 = vld [vmem:[#allocation8 + $0x168] sm:$0xff]
    %v884 = vld [vmem:[#allocation8 + $0x170] sm:$0xff]
    %v885 = vld [vmem:[#allocation8 + $0x178] sm:$0xff]
    %v886 = vld [vmem:[#allocation8 + $0x180] sm:$0xff]
    %v887 = vld [vmem:[#allocation8 + $0x188] sm:$0xff]
    %v888 = vld [vmem:[#allocation8 + $0x190] sm:$0xff]
    %v889 = vld [vmem:[#allocation8 + $0x198] sm:$0xff]
    %v890 = vld [vmem:[#allocation8 + $0x1a0] sm:$0xff]
    %v891 = vld [vmem:[#allocation8 + $0x1a8] sm:$0xff]
    %v892 = vld [vmem:[#allocation8 + $0x1b0] sm:$0xff]
    %v893 = vld [vmem:[#allocation8 + $0x1b8] sm:$0xff]
    %v894 = vld [vmem:[#allocation8 + $0x1c0] sm:$0xff]
    %v895 = vld [vmem:[#allocation8 + $0x1c8] sm:$0xff]
    %v896 = vld [vmem:[#allocation8 + $0x1d0] sm:$0xff]
    %v897 = vld [vmem:[#allocation8 + $0x1d8] sm:$0xff]
    %v898 = vld [vmem:[#allocation8 + $0x1e0] sm:$0xff]
    %v899 = vld [vmem:[#allocation8 + $0x1e8] sm:$0xff]
    %v900 = vld [vmem:[#allocation8 + $0x1f0] sm:$0xff]
    %v901 = vld [vmem:[#allocation8 + $0x1f8] sm:$0xff]
    %902 = vmatprep.subr.mxu0 0.0
    %903 = vmatpush1.msra.mxu0 %v838
    %904 = vmatprep.subr.mxu0 0.0
    %905 = vmatpush1.msra.mxu0 %v839
    %906 = vmatprep.subr.mxu0 0.0
    %907 = vmatpush1.msra.mxu0 %v840
    %908 = vmatprep.subr.mxu0 0.0
    %909 = vmatpush1.msra.mxu0 %v841
    %910 = vmatprep.subr.mxu0 0.0
    %911 = vmatpush1.msra.mxu0 %v842
    %912 = vmatprep.subr.mxu0 0.0
    %913 = vmatpush1.msra.mxu0 %v843
    %914 = vmatprep.subr.mxu0 0.0
    %915 = vmatpush1.msra.mxu0 %v844
    %916 = vmatprep.subr.mxu0 0.0
    %917 = vmatpush1.msra.mxu0 %v845
    %918 = vmatprep.subr.mxu0 0.0
    %919 = vmatpush1.msra.mxu0 %v846
    %920 = vmatprep.subr.mxu0 0.0
    %921 = vmatpush1.msra.mxu0 %v847
    %922 = vmatprep.subr.mxu0 0.0
    %923 = vmatpush1.msra.mxu0 %v848
    %924 = vmatprep.subr.mxu0 0.0
    %925 = vmatpush1.msra.mxu0 %v849
    %926 = vmatprep.subr.mxu0 0.0
    %927 = vmatpush1.msra.mxu0 %v850
    %928 = vmatprep.subr.mxu0 0.0
    %929 = vmatpush1.msra.mxu0 %v851
    %930 = vmatprep.subr.mxu0 0.0
    %931 = vmatpush1.msra.mxu0 %v852
    %932 = vmatprep.subr.mxu0 0.0
    %933 = vmatpush1.msra.mxu0 %v853
    %934 = vmatprep.subr.mxu0 0.0
    %935 = vmatpush1.msra.mxu0 %v854
    %936 = vmatprep.subr.mxu0 0.0
    %937 = vmatpush1.msra.mxu0 %v855
    %938 = vmatprep.subr.mxu0 0.0
    %939 = vmatpush1.msra.mxu0 %v856
    %940 = vmatprep.subr.mxu0 0.0
    %941 = vmatpush1.msra.mxu0 %v857
    %942 = vmatprep.subr.mxu0 0.0
    %943 = vmatpush1.msra.mxu0 %v858
    %944 = vmatprep.subr.mxu0 0.0
    %945 = vmatpush1.msra.mxu0 %v859
    %946 = vmatprep.subr.mxu0 0.0
    %947 = vmatpush1.msra.mxu0 %v860
    %948 = vmatprep.subr.mxu0 0.0
    %949 = vmatpush1.msra.mxu0 %v861
    %950 = vmatprep.subr.mxu0 0.0
    %951 = vmatpush1.msra.mxu0 %v862
    %952 = vmatprep.subr.mxu0 0.0
    %953 = vmatpush1.msra.mxu0 %v863
    %954 = vmatprep.subr.mxu0 0.0
    %955 = vmatpush1.msra.mxu0 %v864
    %956 = vmatprep.subr.mxu0 0.0
    %957 = vmatpush1.msra.mxu0 %v865
    %958 = vmatprep.subr.mxu0 0.0
    %959 = vmatpush1.msra.mxu0 %v866
    %960 = vmatprep.subr.mxu0 0.0
    %961 = vmatpush1.msra.mxu0 %v867
    %962 = vmatprep.subr.mxu0 0.0
    %963 = vmatpush1.msra.mxu0 %v868
    %964 = vmatprep.subr.mxu0 0.0
    %965 = vmatpush1.msra.mxu0 %v869
    %966 = vmatprep.mubr.f32.mxu0 %v759
    %967 = vmatmul.mubr.f32.gmra.mrb[0].mxu0 %v758
    %v968 = vpop.f32.mrb[0].mxu0
    %v969 = vadd.f32 0.0, %v968
    %v970 = vpop.f32.mrb[0].mxu0
    %971 = vmatprep.mubr.f32.mxu0 %v763
    %972 = vmatmul.mubr.f32.gmra.mrb[0].mxu0 %v762
    %v973 = vpop.f32.mrb[0].mxu0
    %v974 = vadd.f32 0.0, %v973
    %v975 = vpop.f32.mrb[0].mxu0
    %976 = vmatprep.mubr.f32.mxu0 %v767
    %977 = vmatmul.mubr.f32.gmra.mrb[0].mxu0 %v766
    %v978 = vpop.f32.mrb[0].mxu0
    %v979 = vadd.f32 0.0, %v978
    %v980 = vpop.f32.mrb[0].mxu0
    %981 = vmatprep.mubr.f32.mxu0 %v771
    %982 = vmatmul.mubr.f32.gmra.mrb[0].mxu0 %v770
    %v983 = vpop.f32.mrb[0].mxu0
    %v984 = vadd.f32 0.0, %v983
    %v985 = vpop.f32.mrb[0].mxu0
    %986 = vmatprep.mubr.f32.mxu0 %v775
    %987 = vmatmul.mubr.f32.gmra.mrb[0].mxu0 %v774
    %v988 = vpop.f32.mrb[0].mxu0
    %v989 = vadd.f32 0.0, %v988
    %v990 = vpop.f32.mrb[0].mxu0
    %991 = vmatprep.mubr.f32.mxu0 %v779
    %992 = vmatmul.mubr.f32.gmra.mrb[0].mxu0 %v778
    %v993 = vpop.f32.mrb[0].mxu0
    %v994 = vadd.f32 0.0, %v993
    %v995 = vpop.f32.mrb[0].mxu0
    %996 = vmatprep.mubr.f32.mxu0 %v783
    %997 = vmatmul.mubr.f32.gmra.mrb[0].mxu0 %v782
    %v998 = vpop.f32.mrb[0].mxu0
    %v999 = vadd.f32 0.0, %v998
    %v1000 = vpop.f32.mrb[0].mxu0
    %1001 = vmatprep.mubr.f32.mxu0 %v787
    %1002 = vmatmul.mubr.f32.gmra.mrb[0].mxu0 %v786
    %v1003 = vpop.f32.mrb[0].mxu0
    %v1004 = vadd.f32 0.0, %v1003
    %v1005 = vpop.f32.mrb[0].mxu0
    %1006 = vmatprep.mubr.f32.mxu0 %v791
    %1007 = vmatmul.mubr.f32.gmra.mrb[0].mxu0 %v790
    %v1008 = vpop.f32.mrb[0].mxu0
    %v1009 = vadd.f32 0.0, %v1008
    %v1010 = vpop.f32.mrb[0].mxu0
    %1011 = vmatprep.mubr.f32.mxu0 %v795
    %1012 = vmatmul.mubr.f32.gmra.mrb[0].mxu0 %v794
    %v1013 = vpop.f32.mrb[0].mxu0
    %v1014 = vadd.f32 0.0, %v1013
    %v1015 = vpop.f32.mrb[0].mxu0
    %1016 = vmatprep.mubr.f32.mxu0 %v799
    %1017 = vmatmul.mubr.f32.gmra.mrb[0].mxu0 %v798
    %v1018 = vpop.f32.mrb[0].mxu0
    %v1019 = vadd.f32 0.0, %v1018
    %v1020 = vpop.f32.mrb[0].mxu0
    %1021 = vmatprep.mubr.f32.mxu0 %v803
    %1022 = vmatmul.mubr.f32.gmra.mrb[0].mxu0 %v802
    %v1023 = vpop.f32.mrb[0].mxu0
    %v1024 = vadd.f32 0.0, %v1023
    %v1025 = vpop.f32.mrb[0].mxu0
    %1026 = vmatprep.mubr.f32.mxu0 %v807
    %1027 = vmatmul.mubr.f32.gmra.mrb[0].mxu0 %v806
    %v1028 = vpop.f32.mrb[0].mxu0
    %v1029 = vadd.f32 0.0, %v1028
    %v1030 = vpop.f32.mrb[0].mxu0
    %1031 = vmatprep.mubr.f32.mxu0 %v811
    %1032 = vmatmul.mubr.f32.gmra.mrb[0].mxu0 %v810
    %v1033 = vpop.f32.mrb[0].mxu0
    %v1034 = vadd.f32 0.0, %v1033
    %v1035 = vpop.f32.mrb[0].mxu0
    %1036 = vmatprep.mubr.f32.mxu0 %v815
    %1037 = vmatmul.mubr.f32.gmra.mrb[0].mxu0 %v814
    %v1038 = vpop.f32.mrb[0].mxu0
    %v1039 = vadd.f32 0.0, %v1038
    %v1040 = vpop.f32.mrb[0].mxu0
    %1041 = vmatprep.mubr.f32.mxu0 %v819
    %1042 = vmatmul.mubr.f32.gmra.mrb[0].mxu0 %v818
    %v1043 = vpop.f32.mrb[0].mxu0
    %v1044 = vadd.f32 0.0, %v1043
    %v1045 = vpop.f32.mrb[0].mxu0
    %1046 = vdwg.mxu0
    %1047 = vmatprep.subr.mxu0 0.0
    %1048 = vmatpush1.msra.mxu0 %v870
    %1049 = vmatprep.subr.mxu0 0.0
    %1050 = vmatpush1.msra.mxu0 %v871
    %1051 = vmatprep.subr.mxu0 0.0
    %1052 = vmatpush1.msra.mxu0 %v872
    %1053 = vmatprep.subr.mxu0 0.0
    %1054 = vmatpush1.msra.mxu0 %v873
    %1055 = vmatprep.subr.mxu0 0.0
    %1056 = vmatpush1.msra.mxu0 %v874
    %1057 = vmatprep.subr.mxu0 0.0
    %1058 = vmatpush1.msra.mxu0 %v875
    %1059 = vmatprep.subr.mxu0 0.0
    %1060 = vmatpush1.msra.mxu0 %v876
    %1061 = vmatprep.subr.mxu0 0.0
    %1062 = vmatpush1.msra.mxu0 %v877
    %1063 = vmatprep.subr.mxu0 0.0
    %1064 = vmatpush1.msra.mxu0 %v878
    %1065 = vmatprep.subr.mxu0 0.0
    %1066 = vmatpush1.msra.mxu0 %v879
    %1067 = vmatprep.subr.mxu0 0.0
    %1068 = vmatpush1.msra.mxu0 %v880
    %1069 = vmatprep.subr.mxu0 0.0
    %1070 = vmatpush1.msra.mxu0 %v881
    %1071 = vmatprep.subr.mxu0 0.0
    %1072 = vmatpush1.msra.mxu0 %v882
    %1073 = vmatprep.subr.mxu0 0.0
    %1074 = vmatpush1.msra.mxu0 %v883
    %1075 = vmatprep.subr.mxu0 0.0
    %1076 = vmatpush1.msra.mxu0 %v884
    %1077 = vmatprep.subr.mxu0 0.0
    %1078 = vmatpush1.msra.mxu0 %v885
    %1079 = vmatprep.subr.mxu0 0.0
    %1080 = vmatpush1.msra.mxu0 %v886
    %1081 = vmatprep.subr.mxu0 0.0
    %1082 = vmatpush1.msra.mxu0 %v887
    %1083 = vmatprep.subr.mxu0 0.0
    %1084 = vmatpush1.msra.mxu0 %v888
    %1085 = vmatprep.subr.mxu0 0.0
    %1086 = vmatpush1.msra.mxu0 %v889
    %1087 = vmatprep.subr.mxu0 0.0
    %1088 = vmatpush1.msra.mxu0 %v890
    %1089 = vmatprep.subr.mxu0 0.0
    %1090 = vmatpush1.msra.mxu0 %v891
    %1091 = vmatprep.subr.mxu0 0.0
    %1092 = vmatpush1.msra.mxu0 %v892
    %1093 = vmatprep.subr.mxu0 0.0
    %1094 = vmatpush1.msra.mxu0 %v893
    %1095 = vmatprep.subr.mxu0 0.0
    %1096 = vmatpush1.msra.mxu0 %v894
    %1097 = vmatprep.subr.mxu0 0.0
    %1098 = vmatpush1.msra.mxu0 %v895
    %1099 = vmatprep.subr.mxu0 0.0
    %1100 = vmatpush1.msra.mxu0 %v896
    %1101 = vmatprep.subr.mxu0 0.0
    %1102 = vmatpush1.msra.mxu0 %v897
    %1103 = vmatprep.subr.mxu0 0.0
    %1104 = vmatpush1.msra.mxu0 %v898
    %1105 = vmatprep.subr.mxu0 0.0
    %1106 = vmatpush1.msra.mxu0 %v899
    %1107 = vmatprep.subr.mxu0 0.0
    %1108 = vmatpush1.msra.mxu0 %v900
    %1109 = vmatprep.subr.mxu0 0.0
    %1110 = vmatpush1.msra.mxu0 %v901
    %1111 = vmatprep.mubr.f32.mxu0 %v761
    %1112 = vmatmul.mubr.f32.gmra.mrb[0].mxu0 %v760
    %v1113 = vpop.f32.mrb[0].mxu0
    %v1114 = vadd.f32 %v969, %v1113
    %v1115 = vpop.f32.mrb[0].mxu0
    %1116 = vmatprep.mubr.f32.mxu0 %v765
    %1117 = vmatmul.mubr.f32.gmra.mrb[0].mxu0 %v764
    %v1118 = vpop.f32.mrb[0].mxu0
    %v1119 = vadd.f32 %v974, %v1118
    %v1120 = vpop.f32.mrb[0].mxu0
    %1121 = vmatprep.mubr.f32.mxu0 %v769
    %1122 = vmatmul.mubr.f32.gmra.mrb[0].mxu0 %v768
    %v1123 = vpop.f32.mrb[0].mxu0
    %v1124 = vadd.f32 %v979, %v1123
    %v1125 = vpop.f32.mrb[0].mxu0
    %1126 = vmatprep.mubr.f32.mxu0 %v773
    %1127 = vmatmul.mubr.f32.gmra.mrb[0].mxu0 %v772
    %v1128 = vpop.f32.mrb[0].mxu0
    %v1129 = vadd.f32 %v984, %v1128
    %v1130 = vpop.f32.mrb[0].mxu0
    %1131 = vmatprep.mubr.f32.mxu0 %v777
    %1132 = vmatmul.mubr.f32.gmra.mrb[0].mxu0 %v776
    %v1133 = vpop.f32.mrb[0].mxu0
    %v1134 = vadd.f32 %v989, %v1133
    %v1135 = vpop.f32.mrb[0].mxu0
    %1136 = vmatprep.mubr.f32.mxu0 %v781
    %1137 = vmatmul.mubr.f32.gmra.mrb[0].mxu0 %v780
    %v1138 = vpop.f32.mrb[0].mxu0
    %v1139 = vadd.f32 %v994, %v1138
    %v1140 = vpop.f32.mrb[0].mxu0
    %1141 = vmatprep.mubr.f32.mxu0 %v785
    %1142 = vmatmul.mubr.f32.gmra.mrb[0].mxu0 %v784
    %v1143 = vpop.f32.mrb[0].mxu0
    %v1144 = vadd.f32 %v999, %v1143
    %v1145 = vpop.f32.mrb[0].mxu0
    %1146 = vmatprep.mubr.f32.mxu0 %v789
    %1147 = vmatmul.mubr.f32.gmra.mrb[0].mxu0 %v788
    %v1148 = vpop.f32.mrb[0].mxu0
    %v1149 = vadd.f32 %v1004, %v1148
    %v1150 = vpop.f32.mrb[0].mxu0
    %1151 = vmatprep.mubr.f32.mxu0 %v793
    %1152 = vmatmul.mubr.f32.gmra.mrb[0].mxu0 %v792
    %v1153 = vpop.f32.mrb[0].mxu0
    %v1154 = vadd.f32 %v1009, %v1153
    %v1155 = vpop.f32.mrb[0].mxu0
    %1156 = vmatprep.mubr.f32.mxu0 %v797
    %1157 = vmatmul.mubr.f32.gmra.mrb[0].mxu0 %v796
    %v1158 = vpop.f32.mrb[0].mxu0
    %v1159 = vadd.f32 %v1014, %v1158
    %v1160 = vpop.f32.mrb[0].mxu0
    %1161 = vmatprep.mubr.f32.mxu0 %v801
    %1162 = vmatmul.mubr.f32.gmra.mrb[0].mxu0 %v800
    %v1163 = vpop.f32.mrb[0].mxu0
    %v1164 = vadd.f32 %v1019, %v1163
    %v1165 = vpop.f32.mrb[0].mxu0
    %1166 = vmatprep.mubr.f32.mxu0 %v805
    %1167 = vmatmul.mubr.f32.gmra.mrb[0].mxu0 %v804
    %v1168 = vpop.f32.mrb[0].mxu0
    %v1169 = vadd.f32 %v1024, %v1168
    %v1170 = vpop.f32.mrb[0].mxu0
    %1171 = vmatprep.mubr.f32.mxu0 %v809
    %1172 = vmatmul.mubr.f32.gmra.mrb[0].mxu0 %v808
    %v1173 = vpop.f32.mrb[0].mxu0
    %v1174 = vadd.f32 %v1029, %v1173
    %v1175 = vpop.f32.mrb[0].mxu0
    %1176 = vmatprep.mubr.f32.mxu0 %v813
    %1177 = vmatmul.mubr.f32.gmra.mrb[0].mxu0 %v812
    %v1178 = vpop.f32.mrb[0].mxu0
    %v1179 = vadd.f32 %v1034, %v1178
    %v1180 = vpop.f32.mrb[0].mxu0
    %1181 = vmatprep.mubr.f32.mxu0 %v817
    %1182 = vmatmul.mubr.f32.gmra.mrb[0].mxu0 %v816
    %v1183 = vpop.f32.mrb[0].mxu0
    %v1184 = vadd.f32 %v1039, %v1183
    %v1185 = vpop.f32.mrb[0].mxu0
    %1186 = vmatprep.mubr.f32.mxu0 %v821
    %1187 = vmatmul.mubr.f32.gmra.mrb[0].mxu0 %v820
    %v1188 = vpop.f32.mrb[0].mxu0
    %v1189 = vadd.f32 %v1044, %v1188
    %v1190 = vpop.f32.mrb[0].mxu0
    %1191 = vdwg.mxu0
    %v1192 = vadd.f32 %v822, %v1114
    %v1193 = vadd.f32 %v823, %v1119
    %v1194 = vadd.f32 %v824, %v1124
    %v1195 = vadd.f32 %v825, %v1129
    %v1196 = vadd.f32 %v826, %v1134
    %v1197 = vadd.f32 %v827, %v1139
    %v1198 = vadd.f32 %v828, %v1144
    %v1199 = vadd.f32 %v829, %v1149
    %v1200 = vadd.f32 %v830, %v1154
    %v1201 = vadd.f32 %v831, %v1159
    %v1202 = vadd.f32 %v832, %v1164
    %v1203 = vadd.f32 %v833, %v1169
    %v1204 = vadd.f32 %v834, %v1174
    %v1205 = vadd.f32 %v835, %v1179
    %v1206 = vadd.f32 %v836, %v1184
    %v1207 = vadd.f32 %v837, %v1189
    %1208 = vst [vmem:[#allocation2] sm:$0xff] %v1192
    %1209 = vst [vmem:[#allocation2 + $0x8] sm:$0xff] %v1193
    %1210 = vst [vmem:[#allocation2 + $0x10] sm:$0xff] %v1194
    %1211 = vst [vmem:[#allocation2 + $0x18] sm:$0xff] %v1195
    %1212 = vst [vmem:[#allocation2 + $0x20] sm:$0xff] %v1196
    %1213 = vst [vmem:[#allocation2 + $0x28] sm:$0xff] %v1197
    %1214 = vst [vmem:[#allocation2 + $0x30] sm:$0xff] %v1198
    %1215 = vst [vmem:[#allocation2 + $0x38] sm:$0xff] %v1199
    %1216 = vst [vmem:[#allocation2 + $0x40] sm:$0xff] %v1200
    %1217 = vst [vmem:[#allocation2 + $0x48] sm:$0xff] %v1201
    %1218 = vst [vmem:[#allocation2 + $0x50] sm:$0xff] %v1202
    %1219 = vst [vmem:[#allocation2 + $0x58] sm:$0xff] %v1203
    %1220 = vst [vmem:[#allocation2 + $0x60] sm:$0xff] %v1204
    %1221 = vst [vmem:[#allocation2 + $0x68] sm:$0xff] %v1205
    %1222 = vst [vmem:[#allocation2 + $0x70] sm:$0xff] %v1206
    %1223 = vst [vmem:[#allocation2 + $0x78] sm:$0xff] %v1207
    %v1224 = vld [vmem:[#allocation2] sm:$0xff]
    %v1225 = vld [vmem:[#allocation2 + $0x8] sm:$0xff]
    %v1226 = vld [vmem:[#allocation2 + $0x10] sm:$0xff]
    %v1227 = vld [vmem:[#allocation2 + $0x18] sm:$0xff]
    %v1228 = vld [vmem:[#allocation2 + $0x20] sm:$0xff]
    %v1229 = vld [vmem:[#allocation2 + $0x28] sm:$0xff]
    %v1230 = vld [vmem:[#allocation2 + $0x30] sm:$0xff]
    %v1231 = vld [vmem:[#allocation2 + $0x38] sm:$0xff]
    %v1232 = vld [vmem:[#allocation2 + $0x40] sm:$0xff]
    %v1233 = vld [vmem:[#allocation2 + $0x48] sm:$0xff]
    %v1234 = vld [vmem:[#allocation2 + $0x50] sm:$0xff]
    %v1235 = vld [vmem:[#allocation2 + $0x58] sm:$0xff]
    %v1236 = vld [vmem:[#allocation2 + $0x60] sm:$0xff]
    %v1237 = vld [vmem:[#allocation2 + $0x68] sm:$0xff]
    %v1238 = vld [vmem:[#allocation2 + $0x70] sm:$0xff]
    %v1239 = vld [vmem:[#allocation2 + $0x78] sm:$0xff]
    %v1240 = vld [vmem:[%s4] sm:$0x1]
    %v1242 = vlaneseq
    %v1243 = vshrl.u32 %v1242, 7
    %v1244 = vsub.s32 0, %v1243
    %v1245 = vrot.slane %v1240, %v1244
    %v1247 = vadd.f32 %v1224, %v1245
    %v1248 = vadd.f32 %v1225, %v1245
    %v1249 = vadd.f32 %v1226, %v1245
    %v1250 = vadd.f32 %v1227, %v1245
    %v1251 = vadd.f32 %v1228, %v1245
    %v1252 = vadd.f32 %v1229, %v1245
    %v1253 = vadd.f32 %v1230, %v1245
    %v1254 = vadd.f32 %v1231, %v1245
    %v1255 = vadd.f32 %v1232, %v1245
    %v1256 = vadd.f32 %v1233, %v1245
    %v1257 = vadd.f32 %v1234, %v1245
    %v1258 = vadd.f32 %v1235, %v1245
    %v1259 = vadd.f32 %v1236, %v1245
    %v1260 = vadd.f32 %v1237, %v1245
    %v1261 = vadd.f32 %v1238, %v1245
    %v1262 = vadd.f32 %v1239, %v1245
    %1263 = vst [vmem:[#allocation9] sm:$0xff] %v1247
    %1264 = vst [vmem:[#allocation9 + $0x8] sm:$0xff] %v1248
    %1265 = vst [vmem:[#allocation9 + $0x10] sm:$0xff] %v1249
    %1266 = vst [vmem:[#allocation9 + $0x18] sm:$0xff] %v1250
    %1267 = vst [vmem:[#allocation9 + $0x20] sm:$0xff] %v1251
    %1268 = vst [vmem:[#allocation9 + $0x28] sm:$0xff] %v1252
    %1269 = vst [vmem:[#allocation9 + $0x30] sm:$0xff] %v1253
    %1270 = vst [vmem:[#allocation9 + $0x38] sm:$0xff] %v1254
    %1271 = vst [vmem:[#allocation9 + $0x40] sm:$0xff] %v1255
    %1272 = vst [vmem:[#allocation9 + $0x48] sm:$0xff] %v1256
    %1273 = vst [vmem:[#allocation9 + $0x50] sm:$0xff] %v1257
    %1274 = vst [vmem:[#allocation9 + $0x58] sm:$0xff] %v1258
    %1275 = vst [vmem:[#allocation9 + $0x60] sm:$0xff] %v1259
    %1276 = vst [vmem:[#allocation9 + $0x68] sm:$0xff] %v1260
    %1277 = vst [vmem:[#allocation9 + $0x70] sm:$0xff] %v1261
    %1278 = vst [vmem:[#allocation9 + $0x78] sm:$0xff] %v1262
    // Predicated region
    $region34: #{tpu_custom_call.1} parent=1 // pred_check
      _
    $region35: #{tpu_custom_call.1} parent=1 // pred_check_branch
      %1280 = sbr.rel (0) target = $region37
    $region36: #{tpu_custom_call.1} parent=1 // pred_region
      %s1282 = ssub.s32 2048, 2048
      %1283 = vsyncadd [#allocation5], %s1282
      %s1284 = sshll.u32 [#allocation9], 4
      %s1285 = int_to_ptr.vmem [resolvable:$true] %s1284
      %1290 = dma.vmem_to_hbm [thread:$0]  %s1285, 2048, %s5, [#allocation5], 128, 128, 8
    $region37: #{tpu_custom_call.1} parent=1 // pred_fallthru
      _
    // Predicated region
    $region38: #{tpu_custom_call.1} parent=1 // pred_check
      _
    $region39: #{tpu_custom_call.1} parent=1 // pred_check_branch
      %1292 = sbr.rel (0) target = $region41
    $region40: #{tpu_custom_call.1} parent=1 // pred_region
      %1293 = dma.done [#allocation5], 2048
    $region41: #{tpu_custom_call.1} parent=1 // pred_fallthru
      _
    %1294 = vsyncpa [#allocation4], 1
    %1295 = vsyncpa [#allocation7], 1
    %1296 = vsyncpa [#allocation5], 1

// kernel: tpu_custom_call.1
$region0: #{tpu_custom_call.1}
  #allocation0 [shape = 'u32[]', space=smem, size = 0x4, offset = 0x4, fixed_abs, tag = 'smem constant byte address 0x4 - core index']
  #allocation1 [shape = 'u32[144,128]{1,0:T(1,128)}', space=vmem, size = 0x12000, scoped, tag = 'internal scratch']
  #allocation2 [shape = 'f32[128,128]{1,0:T(8,128)}', space=vmem, size = 0x10000, scoped, tag = 'scratch operand']
  %s0 = inlined_call_operand.hbm [shape: f32[128,128], index: 0, kind: input, shape index: {}]
  %s1 = inlined_call_operand.hbm [shape: f32[128,512], index: 1, kind: input, shape index: {}]
  %s2 = inlined_call_operand.vmem [shape: f32[1,512], index: 2, kind: input, shape index: {}]
  %s3 = inlined_call_operand.hbm [shape: f32[512,128], index: 3, kind: input, shape index: {}]
  %s4 = inlined_call_operand.vmem [shape: f32[1,128], index: 4, kind: input, shape index: {}]
  %s5 = inlined_call_operand.hbm [shape: f32[128,128], index: 5, kind: output, shape index: {}]
  %s6 = sld [smem:[#allocation0]]
  $region42: #{tpu_custom_call.1} parent=0
    _
  %s8 = ssub.s32 1, %s6
  %s9 = scalar_select 0, %s8, %s6
  $region1: #{tpu_custom_call.1} parent=0
    #allocation3 [shape = 'u8[65536]{0}', space=vmem, size = 0x10000, scoped, tag = 'input window, operand 0, single buffered']
    #allocation4 [shape = 's32[1]{0}', space=sflag, size = 0x4, scoped, tag = 'scoped memory for tpu_custom_call.1']
    #allocation5 [shape = 's32[1]{0}', space=sflag, size = 0x4, scoped, tag = 'scoped memory for tpu_custom_call.1']
    #allocation6 [shape = 'u8[262144]{0}', space=vmem, size = 0x40000, scoped, tag = 'input window, operand 1, single buffered']
    #allocation7 [shape = 's32[1]{0}', space=sflag, size = 0x4, scoped, tag = 'scoped memory for tpu_custom_call.1']
    #allocation8 [shape = 'u8[262144]{0}', space=vmem, size = 0x40000, scoped, tag = 'input window, operand 3, single buffered']
    #allocation9 [shape = 'u8[65536]{0}', space=vmem, size = 0x10000, scoped, tag = 'output window, operand 0, single buffered']
    %10 = vsyncpa [#allocation4], 0
    %11 = vsyncpa [#allocation7], 0
    %12 = vsyncpa [#allocation5], 0
    // Predicated region
    $region2: #{tpu_custom_call.1} parent=1 // pred_check
      _
    $region3: #{tpu_custom_call.1} parent=1 // pred_check_branch
      %14 = sbr.rel (0) target = $region5
    $region4: #{tpu_custom_call.1} parent=1 // pred_region
      %s16 = ssub.s32 2048, 2048
      %17 = vsyncadd [#allocation4], %s16
      %s18 = sshll.u32 [#allocation3], 4
      %s19 = int_to_ptr.vmem [resolvable:$true] %s18
      %24 = dma.hbm_to_vmem [thread:$0]  %s0, 2048, %s19, [#allocation4], 128, 128, 8
    $region5: #{tpu_custom_call.1} parent=1 // pred_fallthru
      _
    // Predicated region
    $region6: #{tpu_custom_call.1} parent=1 // pred_check
      _
    $region7: #{tpu_custom_call.1} parent=1 // pred_check_branch
      %26 = sbr.rel (0) target = $region9
    $region8: #{tpu_custom_call.1} parent=1 // pred_region
      %s28 = ssub.s32 8192, 8192
      %29 = vsyncadd [#allocation7], %s28
      %s30 = sshll.u32 [#allocation6], 4
      %s31 = int_to_ptr.vmem [resolvable:$true] %s30
      %36 = dma.hbm_to_vmem [thread:$0]  %s1, 8192, %s31, [#allocation7], 512, 512, 32
    $region9: #{tpu_custom_call.1} parent=1 // pred_fallthru
      _
    // Predicated region
    $region10: #{tpu_custom_call.1} parent=1 // pred_check
      _
    $region11: #{tpu_custom_call.1} parent=1 // pred_check_branch
      %38 = sbr.rel (0) target = $region13
    $region12: #{tpu_custom_call.1} parent=1 // pred_region
      _
    $region13: #{tpu_custom_call.1} parent=1 // pred_fallthru
      _
    // Predicated region
    $region14: #{tpu_custom_call.1} parent=1 // pred_check
      _
    $region15: #{tpu_custom_call.1} parent=1 // pred_check_branch
      %40 = sbr.rel (0) target = $region17
    $region16: #{tpu_custom_call.1} parent=1 // pred_region
      %s42 = ssub.s32 8192, 8192
      %43 = vsyncadd [#allocation7], %s42
      %s44 = sshll.u32 [#allocation8], 4
      %s45 = int_to_ptr.vmem [resolvable:$true] %s44
      %50 = dma.hbm_to_vmem [thread:$0]  %s3, 8192, %s45, [#allocation7], 128, 128, 8
    $region17: #{tpu_custom_call.1} parent=1 // pred_fallthru
      _
    // Predicated region
    $region18: #{tpu_custom_call.1} parent=1 // pred_check
      _
    $region19: #{tpu_custom_call.1} parent=1 // pred_check_branch
      %52 = sbr.rel (0) target = $region21
    $region20: #{tpu_custom_call.1} parent=1 // pred_region
      _
    $region21: #{tpu_custom_call.1} parent=1 // pred_fallthru
      _
    // Predicated region
    $region22: #{tpu_custom_call.1} parent=1 // pred_check
      _
    $region23: #{tpu_custom_call.1} parent=1 // pred_check_branch
      %54 = sbr.rel (0) target = $region25
    $region24: #{tpu_custom_call.1} parent=1 // pred_region
      %55 = dma.done [#allocation4], 2048
    $region25: #{tpu_custom_call.1} parent=1 // pred_fallthru
      _
    // Predicated region
    $region26: #{tpu_custom_call.1} parent=1 // pred_check
      _
    $region27: #{tpu_custom_call.1} parent=1 // pred_check_branch
      %57 = sbr.rel (0) target = $region29
    $region28: #{tpu_custom_call.1} parent=1 // pred_region
      %58 = dma.done [#allocation7], 8192
    $region29: #{tpu_custom_call.1} parent=1 // pred_fallthru
      _
    // Predicated region
    $region30: #{tpu_custom_call.1} parent=1 // pred_check
      _
    $region31: #{tpu_custom_call.1} parent=1 // pred_check_branch
      %60 = sbr.rel (0) target = $region33
    $region32: #{tpu_custom_call.1} parent=1 // pred_region
      %61 = dma.done [#allocation7], 8192
    $region33: #{tpu_custom_call.1} parent=1 // pred_fallthru
      _
    %v62 = vld [vmem:[#allocation3] sm:$0xff]
    %v63 = vld [vmem:[#allocation3 + $0x8] sm:$0xff]
    %v64 = vld [vmem:[#allocation3 + $0x10] sm:$0xff]
    %v65 = vld [vmem:[#allocation3 + $0x18] sm:$0xff]
    %v66 = vld [vmem:[#allocation3 + $0x20] sm:$0xff]
    %v67 = vld [vmem:[#allocation3 + $0x28] sm:$0xff]
    %v68 = vld [vmem:[#allocation3 + $0x30] sm:$0xff]
    %v69 = vld [vmem:[#allocation3 + $0x38] sm:$0xff]
    %v70 = vld [vmem:[#allocation3 + $0x40] sm:$0xff]
    %v71 = vld [vmem:[#allocation3 + $0x48] sm:$0xff]
    %v72 = vld [vmem:[#allocation3 + $0x50] sm:$0xff]
    %v73 = vld [vmem:[#allocation3 + $0x58] sm:$0xff]
    %v74 = vld [vmem:[#allocation3 + $0x60] sm:$0xff]
    %v75 = vld [vmem:[#allocation3 + $0x68] sm:$0xff]
    %v76 = vld [vmem:[#allocation3 + $0x70] sm:$0xff]
    %v77 = vld [vmem:[#allocation3 + $0x78] sm:$0xff]
    %78 = vst [vmem:[#allocation2] sm:$0xff] 0.0
    %79 = vst [vmem:[#allocation2 + $0x8] sm:$0xff] 0.0
    %80 = vst [vmem:[#allocation2 + $0x10] sm:$0xff] 0.0
    %81 = vst [vmem:[#allocation2 + $0x18] sm:$0xff] 0.0
    %82 = vst [vmem:[#allocation2 + $0x20] sm:$0xff] 0.0
    %83 = vst [vmem:[#allocation2 + $0x28] sm:$0xff] 0.0
    %84 = vst [vmem:[#allocation2 + $0x30] sm:$0xff] 0.0
    %85 = vst [vmem:[#allocation2 + $0x38] sm:$0xff] 0.0
    %86 = vst [vmem:[#allocation2 + $0x40] sm:$0xff] 0.0
    %87 = vst [vmem:[#allocation2 + $0x48] sm:$0xff] 0.0
    %88 = vst [vmem:[#allocation2 + $0x50] sm:$0xff] 0.0
    %89 = vst [vmem:[#allocation2 + $0x58] sm:$0xff] 0.0
    %90 = vst [vmem:[#allocation2 + $0x60] sm:$0xff] 0.0
    %91 = vst [vmem:[#allocation2 + $0x68] sm:$0xff] 0.0
    %92 = vst [vmem:[#allocation2 + $0x70] sm:$0xff] 0.0
    %93 = vst [vmem:[#allocation2 + $0x78] sm:$0xff] 0.0
    %v94 = vld [vmem:[#allocation6] sm:$0xff]
    %v95 = vld [vmem:[#allocation6 + $0x8] sm:$0xff]
    %v96 = vld [vmem:[#allocation6 + $0x10] sm:$0xff]
    %v97 = vld [vmem:[#allocation6 + $0x18] sm:$0xff]
    %v98 = vld [vmem:[#allocation6 + $0x20] sm:$0xff]
    %v99 = vld [vmem:[#allocation6 + $0x28] sm:$0xff]
    %v100 = vld [vmem:[#allocation6 + $0x30] sm:$0xff]
    %v101 = vld [vmem:[#allocation6 + $0x38] sm:$0xff]
    %v102 = vld [vmem:[#allocation6 + $0x40] sm:$0xff]
    %v103 = vld [vmem:[#allocation6 + $0x48] sm:$0xff]
    %v104 = vld [vmem:[#allocation6 + $0x50] sm:$0xff]
    %v105 = vld [vmem:[#allocation6 + $0x58] sm:$0xff]
    %v106 = vld [vmem:[#allocation6 + $0x60] sm:$0xff]
    %v107 = vld [vmem:[#allocation6 + $0x68] sm:$0xff]
    %v108 = vld [vmem:[#allocation6 + $0x70] sm:$0xff]
    %v109 = vld [vmem:[#allocation6 + $0x78] sm:$0xff]
    %v110 = vld [vmem:[#allocation6 + $0x80] sm:$0xff]
    %v111 = vld [vmem:[#allocation6 + $0x88] sm:$0xff]
    %v112 = vld [vmem:[#allocation6 + $0x90] sm:$0xff]
    %v113 = vld [vmem:[#allocation6 + $0x98] sm:$0xff]
    %v114 = vld [vmem:[#allocation6 + $0xa0] sm:$0xff]
    %v115 = vld [vmem:[#allocation6 + $0xa8] sm:$0xff]
    %v116 = vld [vmem:[#allocation6 + $0xb0] sm:$0xff]
    %v117 = vld [vmem:[#allocation6 + $0xb8] sm:$0xff]
    %v118 = vld [vmem:[#allocation6 + $0xc0] sm:$0xff]
    %v119 = vld [vmem:[#allocation6 + $0xc8] sm:$0xff]
    %v120 = vld [vmem:[#allocation6 + $0xd0] sm:$0xff]
    %v121 = vld [vmem:[#allocation6 + $0xd8] sm:$0xff]
    %v122 = vld [vmem:[#allocation6 + $0xe0] sm:$0xff]
    %v123 = vld [vmem:[#allocation6 + $0xe8] sm:$0xff]
    %v124 = vld [vmem:[#allocation6 + $0xf0] sm:$0xff]
    %v125 = vld [vmem:[#allocation6 + $0xf8] sm:$0xff]
    %v126 = vld [vmem:[#allocation6 + $0x100] sm:$0xff]
    %v127 = vld [vmem:[#allocation6 + $0x108] sm:$0xff]
    %v128 = vld [vmem:[#allocation6 + $0x110] sm:$0xff]
    %v129 = vld [vmem:[#allocation6 + $0x118] sm:$0xff]
    %v130 = vld [vmem:[#allocation6 + $0x120] sm:$0xff]
    %v131 = vld [vmem:[#allocation6 + $0x128] sm:$0xff]
    %v132 = vld [vmem:[#allocation6 + $0x130] sm:$0xff]
    %v133 = vld [vmem:[#allocation6 + $0x138] sm:$0xff]
    %v134 = vld [vmem:[#allocation6 + $0x140] sm:$0xff]
    %v135 = vld [vmem:[#allocation6 + $0x148] sm:$0xff]
    %v136 = vld [vmem:[#allocation6 + $0x150] sm:$0xff]
    %v137 = vld [vmem:[#allocation6 + $0x158] sm:$0xff]
    %v138 = vld [vmem:[#allocation6 + $0x160] sm:$0xff]
    %v139 = vld [vmem:[#allocation6 + $0x168] sm:$0xff]
    %v140 = vld [vmem:[#allocation6 + $0x170] sm:$0xff]
    %v141 = vld [vmem:[#allocation6 + $0x178] sm:$0xff]
    %v142 = vld [vmem:[#allocation6 + $0x180] sm:$0xff]
    %v143 = vld [vmem:[#allocation6 + $0x188] sm:$0xff]
    %v144 = vld [vmem:[#allocation6 + $0x190] sm:$0xff]
    %v145 = vld [vmem:[#allocation6 + $0x198] sm:$0xff]
    %v146 = vld [vmem:[#allocation6 + $0x1a0] sm:$0xff]
    %v147 = vld [vmem:[#allocation6 + $0x1a8] sm:$0xff]
    %v148 = vld [vmem:[#allocation6 + $0x1b0] sm:$0xff]
    %v149 = vld [vmem:[#allocation6 + $0x1b8] sm:$0xff]
    %v150 = vld [vmem:[#allocation6 + $0x1c0] sm:$0xff]
    %v151 = vld [vmem:[#allocation6 + $0x1c8] sm:$0xff]
    %v152 = vld [vmem:[#allocation6 + $0x1d0] sm:$0xff]
    %v153 = vld [vmem:[#allocation6 + $0x1d8] sm:$0xff]
    %v154 = vld [vmem:[#allocation6 + $0x1e0] sm:$0xff]
    %v155 = vld [vmem:[#allocation6 + $0x1e8] sm:$0xff]
    %v156 = vld [vmem:[#allocation6 + $0x1f0] sm:$0xff]
    %v157 = vld [vmem:[#allocation6 + $0x1f8] sm:$0xff]
    %v158 = vld [vmem:[%s2] sm:$0xf]
    %v160 = vlaneseq
    %v161 = vshrl.u32 %v160, 7
    %v162 = vsub.s32 0, %v161
    %v163 = vrot.slane %v158, %v162
    %v164 = vlaneseq
    %v165 = vshrl.u32 %v164, 7
    %v166 = vsub.s32 1, %v165
    %v167 = vrot.slane %v158, %v166
    %v168 = vlaneseq
    %v169 = vshrl.u32 %v168, 7
    %v170 = vsub.s32 2, %v169
    %v171 = vrot.slane %v158, %v170
    %v172 = vlaneseq
    %v173 = vshrl.u32 %v172, 7
    %v174 = vsub.s32 3, %v173
    %v175 = vrot.slane %v158, %v174
    %180 = vmatprep.subr.mxu0 %v95
    %181 = vmatpush1.msra.mxu0 %v94
    %182 = vmatprep.subr.mxu0 %v99
    %183 = vmatpush1.msra.mxu0 %v98
    %184 = vmatprep.subr.mxu0 %v103
    %185 = vmatpush1.msra.mxu0 %v102
    %186 = vmatprep.subr.mxu0 %v107
    %187 = vmatpush1.msra.mxu0 %v106
    %188 = vmatprep.subr.mxu0 %v111
    %189 = vmatpush1.msra.mxu0 %v110
    %190 = vmatprep.subr.mxu0 %v115
    %191 = vmatpush1.msra.mxu0 %v114
    %192 = vmatprep.subr.mxu0 %v119
    %193 = vmatpush1.msra.mxu0 %v118
    %194 = vmatprep.subr.mxu0 %v123
    %195 = vmatpush1.msra.mxu0 %v122
    %196 = vmatprep.subr.mxu0 %v127
    %197 = vmatpush1.msra.mxu0 %v126
    %198 = vmatprep.subr.mxu0 %v131
    %199 = vmatpush1.msra.mxu0 %v130
    %200 = vmatprep.subr.mxu0 %v135
    %201 = vmatpush1.msra.mxu0 %v134
    %202 = vmatprep.subr.mxu0 %v139
    %203 = vmatpush1.msra.mxu0 %v138
    %204 = vmatprep.subr.mxu0 %v143
    %205 = vmatpush1.msra.mxu0 %v142
    %206 = vmatprep.subr.mxu0 %v147
    %207 = vmatpush1.msra.mxu0 %v146
    %208 = vmatprep.subr.mxu0 %v151
    %209 = vmatpush1.msra.mxu0 %v150
    %210 = vmatprep.subr.mxu0 %v155
    %211 = vmatpush1.msra.mxu0 %v154
    %212 = vmatprep.subr.mxu0 0.0
    %213 = vmatpush1.msra.mxu0 0.0
    %214 = vmatprep.subr.mxu0 0.0
    %215 = vmatpush1.msra.mxu0 0.0
    %216 = vmatprep.subr.mxu0 0.0
    %217 = vmatpush1.msra.mxu0 0.0
    %218 = vmatprep.subr.mxu0 0.0
    %219 = vmatpush1.msra.mxu0 0.0
    %220 = vmatprep.subr.mxu0 0.0
    %221 = vmatpush1.msra.mxu0 0.0
    %222 = vmatprep.subr.mxu0 0.0
    %223 = vmatpush1.msra.mxu0 0.0
    %224 = vmatprep.subr.mxu0 0.0
    %225 = vmatpush1.msra.mxu0 0.0
    %226 = vmatprep.subr.mxu0 0.0
    %227 = vmatpush1.msra.mxu0 0.0
    %228 = vmatprep.subr.mxu0 0.0
    %229 = vmatpush1.msra.mxu0 0.0
    %230 = vmatprep.subr.mxu0 0.0
    %231 = vmatpush1.msra.mxu0 0.0
    %232 = vmatprep.subr.mxu0 0.0
    %233 = vmatpush1.msra.mxu0 0.0
    %234 = vmatprep.subr.mxu0 0.0
    %235 = vmatpush1.msra.mxu0 0.0
    %236 = vmatprep.subr.mxu0 0.0
    %237 = vmatpush1.msra.mxu0 0.0
    %238 = vmatprep.subr.mxu0 0.0
    %239 = vmatpush1.msra.mxu0 0.0
    %240 = vmatprep.subr.mxu0 0.0
    %241 = vmatpush1.msra.mxu0 0.0
    %242 = vmatprep.subr.mxu0 0.0
    %243 = vmatpush1.msra.mxu0 0.0
    %244 = vmatprep.mubr.f32.mxu0 0.0
    %245 = vmatmul.mubr.f32.gmra.mrb[0].mxu0 %v62
    %v246 = vpop.f32.mrb[0].mxu0
    %v247 = vadd.f32 %v163, %v246
    %v248 = vpop.f32.mrb[0].mxu0
    %v249 = vadd.f32 %v167, %v248
    %250 = vmatprep.mubr.f32.mxu0 0.0
    %251 = vmatmul.mubr.f32.gmra.mrb[0].mxu0 %v63
    %v252 = vpop.f32.mrb[0].mxu0
    %v253 = vadd.f32 %v163, %v252
    %v254 = vpop.f32.mrb[0].mxu0
    %v255 = vadd.f32 %v167, %v254
    %256 = vmatprep.mubr.f32.mxu0 0.0
    %257 = vmatmul.mubr.f32.gmra.mrb[0].mxu0 %v64
    %v258 = vpop.f32.mrb[0].mxu0
    %v259 = vadd.f32 %v163, %v258
    %v260 = vpop.f32.mrb[0].mxu0
    %v261 = vadd.f32 %v167, %v260
    %262 = vmatprep.mubr.f32.mxu0 0.0
    %263 = vmatmul.mubr.f32.gmra.mrb[0].mxu0 %v65
    %v264 = vpop.f32.mrb[0].mxu0
    %v265 = vadd.f32 %v163, %v264
    %v266 = vpop.f32.mrb[0].mxu0
    %v267 = vadd.f32 %v167, %v266
    %268 = vmatprep.mubr.f32.mxu0 0.0
    %269 = vmatmul.mubr.f32.gmra.mrb[0].mxu0 %v66
    %v270 = vpop.f32.mrb[0].mxu0
    %v271 = vadd.f32 %v163, %v270
    %v272 = vpop.f32.mrb[0].mxu0
    %v273 = vadd.f32 %v167, %v272
    %274 = vmatprep.mubr.f32.mxu0 0.0
    %275 = vmatmul.mubr.f32.gmra.mrb[0].mxu0 %v67
    %v276 = vpop.f32.mrb[0].mxu0
    %v277 = vadd.f32 %v163, %v276
    %v278 = vpop.f32.mrb[0].mxu0
    %v279 = vadd.f32 %v167, %v278
    %280 = vmatprep.mubr.f32.mxu0 0.0
    %281 = vmatmul.mubr.f32.gmra.mrb[0].mxu0 %v68
    %v282 = vpop.f32.mrb[0].mxu0
    %v283 = vadd.f32 %v163, %v282
    %v284 = vpop.f32.mrb[0].mxu0
    %v285 = vadd.f32 %v167, %v284
    %286 = vmatprep.mubr.f32.mxu0 0.0
    %287 = vmatmul.mubr.f32.gmra.mrb[0].mxu0 %v69
    %v288 = vpop.f32.mrb[0].mxu0
    %v289 = vadd.f32 %v163, %v288
    %v290 = vpop.f32.mrb[0].mxu0
    %v291 = vadd.f32 %v167, %v290
    %292 = vmatprep.mubr.f32.mxu0 0.0
    %293 = vmatmul.mubr.f32.gmra.mrb[0].mxu0 %v70
    %v294 = vpop.f32.mrb[0].mxu0
    %v295 = vadd.f32 %v163, %v294
    %v296 = vpop.f32.mrb[0].mxu0
    %v297 = vadd.f32 %v167, %v296
    %298 = vmatprep.mubr.f32.mxu0 0.0
    %299 = vmatmul.mubr.f32.gmra.mrb[0].mxu0 %v71
    %v300 = vpop.f32.mrb[0].mxu0
    %v301 = vadd.f32 %v163, %v300
    %v302 = vpop.f32.mrb[0].mxu0
    %v303 = vadd.f32 %v167, %v302
    %304 = vmatprep.mubr.f32.mxu0 0.0
    %305 = vmatmul.mubr.f32.gmra.mrb[0].mxu0 %v72
    %v306 = vpop.f32.mrb[0].mxu0
    %v307 = vadd.f32 %v163, %v306
    %v308 = vpop.f32.mrb[0].mxu0
    %v309 = vadd.f32 %v167, %v308
    %310 = vmatprep.mubr.f32.mxu0 0.0
    %311 = vmatmul.mubr.f32.gmra.mrb[0].mxu0 %v73
    %v312 = vpop.f32.mrb[0].mxu0
    %v313 = vadd.f32 %v163, %v312
    %v314 = vpop.f32.mrb[0].mxu0
    %v315 = vadd.f32 %v167, %v314
    %316 = vmatprep.mubr.f32.mxu0 0.0
    %317 = vmatmul.mubr.f32.gmra.mrb[0].mxu0 %v74
    %v318 = vpop.f32.mrb[0].mxu0
    %v319 = vadd.f32 %v163, %v318
    %v320 = vpop.f32.mrb[0].mxu0
    %v321 = vadd.f32 %v167, %v320
    %322 = vmatprep.mubr.f32.mxu0 0.0
    %323 = vmatmul.mubr.f32.gmra.mrb[0].mxu0 %v75
    %v324 = vpop.f32.mrb[0].mxu0
    %v325 = vadd.f32 %v163, %v324
    %v326 = vpop.f32.mrb[0].mxu0
    %v327 = vadd.f32 %v167, %v326
    %328 = vmatprep.mubr.f32.mxu0 0.0
    %329 = vmatmul.mubr.f32.gmra.mrb[0].mxu0 %v76
    %v330 = vpop.f32.mrb[0].mxu0
    %v331 = vadd.f32 %v163, %v330
    %v332 = vpop.f32.mrb[0].mxu0
    %v333 = vadd.f32 %v167, %v332
    %334 = vmatprep.mubr.f32.mxu0 0.0
    %335 = vmatmul.mubr.f32.gmra.mrb[0].mxu0 %v77
    %v336 = vpop.f32.mrb[0].mxu0
    %v337 = vadd.f32 %v163, %v336
    %v338 = vpop.f32.mrb[0].mxu0
    %v339 = vadd.f32 %v167, %v338
    %340 = vdwg.mxu0
    %341 = vmatprep.subr.mxu0 %v97
    %342 = vmatpush1.msra.mxu0 %v96
    %343 = vmatprep.subr.mxu0 %v101
    %344 = vmatpush1.msra.mxu0 %v100
    %345 = vmatprep.subr.mxu0 %v105
    %346 = vmatpush1.msra.mxu0 %v104
    %347 = vmatprep.subr.mxu0 %v109
    %348 = vmatpush1.msra.mxu0 %v108
    %349 = vmatprep.subr.mxu0 %v113
    %350 = vmatpush1.msra.mxu0 %v112
    %351 = vmatprep.subr.mxu0 %v117
    %352 = vmatpush1.msra.mxu0 %v116
    %353 = vmatprep.subr.mxu0 %v121
    %354 = vmatpush1.msra.mxu0 %v120
    %355 = vmatprep.subr.mxu0 %v125
    %356 = vmatpush1.msra.mxu0 %v124
    %357 = vmatprep.subr.mxu0 %v129
    %358 = vmatpush1.msra.mxu0 %v128
    %359 = vmatprep.subr.mxu0 %v133
    %360 = vmatpush1.msra.mxu0 %v132
    %361 = vmatprep.subr.mxu0 %v137
    %362 = vmatpush1.msra.mxu0 %v136
    %363 = vmatprep.subr.mxu0 %v141
    %364 = vmatpush1.msra.mxu0 %v140
    %365 = vmatprep.subr.mxu0 %v145
    %366 = vmatpush1.msra.mxu0 %v144
    %367 = vmatprep.subr.mxu0 %v149
    %368 = vmatpush1.msra.mxu0 %v148
    %369 = vmatprep.subr.mxu0 %v153
    %370 = vmatpush1.msra.mxu0 %v152
    %371 = vmatprep.subr.mxu0 %v157
    %372 = vmatpush1.msra.mxu0 %v156
    %373 = vmatprep.subr.mxu0 0.0
    %374 = vmatpush1.msra.mxu0 0.0
    %375 = vmatprep.subr.mxu0 0.0
    %376 = vmatpush1.msra.mxu0 0.0
    %377 = vmatprep.subr.mxu0 0.0
    %378 = vmatpush1.msra.mxu0 0.0
    %379 = vmatprep.subr.mxu0 0.0
    %380 = vmatpush1.msra.mxu0 0.0
    %381 = vmatprep.subr.mxu0 0.0
    %382 = vmatpush1.msra.mxu0 0.0
    %383 = vmatprep.subr.mxu0 0.0
    %384 = vmatpush1.msra.mxu0 0.0
    %385 = vmatprep.subr.mxu0 0.0
    %386 = vmatpush1.msra.mxu0 0.0
    %387 = vmatprep.subr.mxu0 0.0
    %388 = vmatpush1.msra.mxu0 0.0
    %389 = vmatprep.subr.mxu0 0.0
    %390 = vmatpush1.msra.mxu0 0.0
    %391 = vmatprep.subr.mxu0 0.0
    %392 = vmatpush1.msra.mxu0 0.0
    %393 = vmatprep.subr.mxu0 0.0
    %394 = vmatpush1.msra.mxu0 0.0
    %395 = vmatprep.subr.mxu0 0.0
    %396 = vmatpush1.msra.mxu0 0.0
    %397 = vmatprep.subr.mxu0 0.0
    %398 = vmatpush1.msra.mxu0 0.0
    %399 = vmatprep.subr.mxu0 0.0
    %400 = vmatpush1.msra.mxu0 0.0
    %401 = vmatprep.subr.mxu0 0.0
    %402 = vmatpush1.msra.mxu0 0.0
    %403 = vmatprep.subr.mxu0 0.0
    %404 = vmatpush1.msra.mxu0 0.0
    %405 = vmatprep.mubr.f32.mxu0 0.0
    %406 = vmatmul.mubr.f32.gmra.mrb[0].mxu0 %v62
    %v407 = vpop.f32.mrb[0].mxu0
    %v408 = vadd.f32 %v171, %v407
    %v409 = vpop.f32.mrb[0].mxu0
    %v410 = vadd.f32 %v175, %v409
    %411 = vmatprep.mubr.f32.mxu0 0.0
    %412 = vmatmul.mubr.f32.gmra.mrb[0].mxu0 %v63
    %v413 = vpop.f32.mrb[0].mxu0
    %v414 = vadd.f32 %v171, %v413
    %v415 = vpop.f32.mrb[0].mxu0
    %v416 = vadd.f32 %v175, %v415
    %417 = vmatprep.mubr.f32.mxu0 0.0
    %418 = vmatmul.mubr.f32.gmra.mrb[0].mxu0 %v64
    %v419 = vpop.f32.mrb[0].mxu0
    %v420 = vadd.f32 %v171, %v419
    %v421 = vpop.f32.mrb[0].mxu0
    %v422 = vadd.f32 %v175, %v421
    %423 = vmatprep.mubr.f32.mxu0 0.0
    %424 = vmatmul.mubr.f32.gmra.mrb[0].mxu0 %v65
    %v425 = vpop.f32.mrb[0].mxu0
    %v426 = vadd.f32 %v171, %v425
    %v427 = vpop.f32.mrb[0].mxu0
    %v428 = vadd.f32 %v175, %v427
    %429 = vmatprep.mubr.f32.mxu0 0.0
    %430 = vmatmul.mubr.f32.gmra.mrb[0].mxu0 %v66
    %v431 = vpop.f32.mrb[0].mxu0
    %v432 = vadd.f32 %v171, %v431
    %v433 = vpop.f32.mrb[0].mxu0
    %v434 = vadd.f32 %v175, %v433
    %435 = vmatprep.mubr.f32.mxu0 0.0
    %436 = vmatmul.mubr.f32.gmra.mrb[0].mxu0 %v67
    %v437 = vpop.f32.mrb[0].mxu0
    %v438 = vadd.f32 %v171, %v437
    %v439 = vpop.f32.mrb[0].mxu0
    %v440 = vadd.f32 %v175, %v439
    %441 = vmatprep.mubr.f32.mxu0 0.0
    %442 = vmatmul.mubr.f32.gmra.mrb[0].mxu0 %v68
    %v443 = vpop.f32.mrb[0].mxu0
    %v444 = vadd.f32 %v171, %v443
    %v445 = vpop.f32.mrb[0].mxu0
    %v446 = vadd.f32 %v175, %v445
    %447 = vmatprep.mubr.f32.mxu0 0.0
    %448 = vmatmul.mubr.f32.gmra.mrb[0].mxu0 %v69
    %v449 = vpop.f32.mrb[0].mxu0
    %v450 = vadd.f32 %v171, %v449
    %v451 = vpop.f32.mrb[0].mxu0
    %v452 = vadd.f32 %v175, %v451
    %453 = vmatprep.mubr.f32.mxu0 0.0
    %454 = vmatmul.mubr.f32.gmra.mrb[0].mxu0 %v70
    %v455 = vpop.f32.mrb[0].mxu0
    %v456 = vadd.f32 %v171, %v455
    %v457 = vpop.f32.mrb[0].mxu0
    %v458 = vadd.f32 %v175, %v457
    %459 = vmatprep.mubr.f32.mxu0 0.0
    %460 = vmatmul.mubr.f32.gmra.mrb[0].mxu0 %v71
    %v461 = vpop.f32.mrb[0].mxu0
    %v462 = vadd.f32 %v171, %v461
    %v463 = vpop.f32.mrb[0].mxu0
    %v464 = vadd.f32 %v175, %v463
    %465 = vmatprep.mubr.f32.mxu0 0.0
    %466 = vmatmul.mubr.f32.gmra.mrb[0].mxu0 %v72
    %v467 = vpop.f32.mrb[0].mxu0
    %v468 = vadd.f32 %v171, %v467
    %v469 = vpop.f32.mrb[0].mxu0
    %v470 = vadd.f32 %v175, %v469
    %471 = vmatprep.mubr.f32.mxu0 0.0
    %472 = vmatmul.mubr.f32.gmra.mrb[0].mxu0 %v73
    %v473 = vpop.f32.mrb[0].mxu0
    %v474 = vadd.f32 %v171, %v473
    %v475 = vpop.f32.mrb[0].mxu0
    %v476 = vadd.f32 %v175, %v475
    %477 = vmatprep.mubr.f32.mxu0 0.0
    %478 = vmatmul.mubr.f32.gmra.mrb[0].mxu0 %v74
    %v479 = vpop.f32.mrb[0].mxu0
    %v480 = vadd.f32 %v171, %v479
    %v481 = vpop.f32.mrb[0].mxu0
    %v482 = vadd.f32 %v175, %v481
    %483 = vmatprep.mubr.f32.mxu0 0.0
    %484 = vmatmul.mubr.f32.gmra.mrb[0].mxu0 %v75
    %v485 = vpop.f32.mrb[0].mxu0
    %v486 = vadd.f32 %v171, %v485
    %v487 = vpop.f32.mrb[0].mxu0
    %v488 = vadd.f32 %v175, %v487
    %489 = vmatprep.mubr.f32.mxu0 0.0
    %490 = vmatmul.mubr.f32.gmra.mrb[0].mxu0 %v76
    %v491 = vpop.f32.mrb[0].mxu0
    %v492 = vadd.f32 %v171, %v491
    %v493 = vpop.f32.mrb[0].mxu0
    %v494 = vadd.f32 %v175, %v493
    %495 = vmatprep.mubr.f32.mxu0 0.0
    %496 = vmatmul.mubr.f32.gmra.mrb[0].mxu0 %v77
    %v497 = vpop.f32.mrb[0].mxu0
    %v498 = vadd.f32 %v171, %v497
    %v499 = vpop.f32.mrb[0].mxu0
    %v500 = vadd.f32 %v175, %v499
    %501 = vdwg.mxu0
    %v502 = vmul.f32 %v247, 0.5
    %v503 = vmul.f32 %v249, 0.5
    %v504 = vmul.f32 %v408, 0.5
    %v505 = vmul.f32 %v410, 0.5
    %v506 = vmul.f32 %v253, 0.5
    %v507 = vmul.f32 %v255, 0.5
    %v508 = vmul.f32 %v414, 0.5
    %v509 = vmul.f32 %v416, 0.5
    %v510 = vmul.f32 %v259, 0.5
    %v511 = vmul.f32 %v261, 0.5
    %v512 = vmul.f32 %v420, 0.5
    %v513 = vmul.f32 %v422, 0.5
    %v514 = vmul.f32 %v265, 0.5
    %v515 = vmul.f32 %v267, 0.5
    %v516 = vmul.f32 %v426, 0.5
    %v517 = vmul.f32 %v428, 0.5
    %v518 = vmul.f32 %v271, 0.5
    %v519 = vmul.f32 %v273, 0.5
    %v520 = vmul.f32 %v432, 0.5
    %v521 = vmul.f32 %v434, 0.5
    %v522 = vmul.f32 %v277, 0.5
    %v523 = vmul.f32 %v279, 0.5
    %v524 = vmul.f32 %v438, 0.5
    %v525 = vmul.f32 %v440, 0.5
    %v526 = vmul.f32 %v283, 0.5
    %v527 = vmul.f32 %v285, 0.5
    %v528 = vmul.f32 %v444, 0.5
    %v529 = vmul.f32 %v446, 0.5
    %v530 = vmul.f32 %v289, 0.5
    %v531 = vmul.f32 %v291, 0.5
    %v532 = vmul.f32 %v450, 0.5
    %v533 = vmul.f32 %v452, 0.5
    %v534 = vmul.f32 %v295, 0.5
    %v535 = vmul.f32 %v297, 0.5
    %v536 = vmul.f32 %v456, 0.5
    %v537 = vmul.f32 %v458, 0.5
    %v538 = vmul.f32 %v301, 0.5
    %v539 = vmul.f32 %v303, 0.5
    %v540 = vmul.f32 %v462, 0.5
    %v541 = vmul.f32 %v464, 0.5
    %v542 = vmul.f32 %v307, 0.5
    %v543 = vmul.f32 %v309, 0.5
    %v544 = vmul.f32 %v468, 0.5
    %v545 = vmul.f32 %v470, 0.5
    %v546 = vmul.f32 %v313, 0.5
    %v547 = vmul.f32 %v315, 0.5
    %v548 = vmul.f32 %v474, 0.5
    %v549 = vmul.f32 %v476, 0.5
    %v550 = vmul.f32 %v319, 0.5
    %v551 = vmul.f32 %v321, 0.5
    %v552 = vmul.f32 %v480, 0.5
    %v553 = vmul.f32 %v482, 0.5
    %v554 = vmul.f32 %v325, 0.5
    %v555 = vmul.f32 %v327, 0.5
    %v556 = vmul.f32 %v486, 0.5
    %v557 = vmul.f32 %v488, 0.5
    %v558 = vmul.f32 %v331, 0.5
    %v559 = vmul.f32 %v333, 0.5
    %v560 = vmul.f32 %v492, 0.5
    %v561 = vmul.f32 %v494, 0.5
    %v562 = vmul.f32 %v337, 0.5
    %v563 = vmul.f32 %v339, 0.5
    %v564 = vmul.f32 %v498, 0.5
    %v565 = vmul.f32 %v500, 0.5
    %v566 = vmul.f32 %v247, 0.70710677
    %v567 = vmul.f32 %v249, 0.70710677
    %v568 = vmul.f32 %v408, 0.70710677
    %v569 = vmul.f32 %v410, 0.70710677
    %v570 = vmul.f32 %v253, 0.70710677
    %v571 = vmul.f32 %v255, 0.70710677
    %v572 = vmul.f32 %v414, 0.70710677
    %v573 = vmul.f32 %v416, 0.70710677
    %v574 = vmul.f32 %v259, 0.70710677
    %v575 = vmul.f32 %v261, 0.70710677
    %v576 = vmul.f32 %v420, 0.70710677
    %v577 = vmul.f32 %v422, 0.70710677
    %v578 = vmul.f32 %v265, 0.70710677
    %v579 = vmul.f32 %v267, 0.70710677
    %v580 = vmul.f32 %v426, 0.70710677
    %v581 = vmul.f32 %v428, 0.70710677
    %v582 = vmul.f32 %v271, 0.70710677
    %v583 = vmul.f32 %v273, 0.70710677
    %v584 = vmul.f32 %v432, 0.70710677
    %v585 = vmul.f32 %v434, 0.70710677
    %v586 = vmul.f32 %v277, 0.70710677
    %v587 = vmul.f32 %v279, 0.70710677
    %v588 = vmul.f32 %v438, 0.70710677
    %v589 = vmul.f32 %v440, 0.70710677
    %v590 = vmul.f32 %v283, 0.70710677
    %v591 = vmul.f32 %v285, 0.70710677
    %v592 = vmul.f32 %v444, 0.70710677
    %v593 = vmul.f32 %v446, 0.70710677
    %v594 = vmul.f32 %v289, 0.70710677
    %v595 = vmul.f32 %v291, 0.70710677
    %v596 = vmul.f32 %v450, 0.70710677
    %v597 = vmul.f32 %v452, 0.70710677
    %v598 = vmul.f32 %v295, 0.70710677
    %v599 = vmul.f32 %v297, 0.70710677
    %v600 = vmul.f32 %v456, 0.70710677
    %v601 = vmul.f32 %v458, 0.70710677
    %v602 = vmul.f32 %v301, 0.70710677
    %v603 = vmul.f32 %v303, 0.70710677
    %v604 = vmul.f32 %v462, 0.70710677
    %v605 = vmul.f32 %v464, 0.70710677
    %v606 = vmul.f32 %v307, 0.70710677
    %v607 = vmul.f32 %v309, 0.70710677
    %v608 = vmul.f32 %v468, 0.70710677
    %v609 = vmul.f32 %v470, 0.70710677
    %v610 = vmul.f32 %v313, 0.70710677
    %v611 = vmul.f32 %v315, 0.70710677
    %v612 = vmul.f32 %v474, 0.70710677
    %v613 = vmul.f32 %v476, 0.70710677
    %v614 = vmul.f32 %v319, 0.70710677
    %v615 = vmul.f32 %v321, 0.70710677
    %v616 = vmul.f32 %v480, 0.70710677
    %v617 = vmul.f32 %v482, 0.70710677
    %v618 = vmul.f32 %v325, 0.70710677
    %v619 = vmul.f32 %v327, 0.70710677
    %v620 = vmul.f32 %v486, 0.70710677
    %v621 = vmul.f32 %v488, 0.70710677
    %v622 = vmul.f32 %v331, 0.70710677
    %v623 = vmul.f32 %v333, 0.70710677
    %v624 = vmul.f32 %v492, 0.70710677
    %v625 = vmul.f32 %v494, 0.70710677
    %v626 = vmul.f32 %v337, 0.70710677
    %v627 = vmul.f32 %v339, 0.70710677
    %v628 = vmul.f32 %v498, 0.70710677
    %v629 = vmul.f32 %v500, 0.70710677
    %v630 = verf.f32.pop %v566
    %v631 = verf.f32.pop %v567
    %v632 = verf.f32.pop %v568
    %v633 = verf.f32.pop %v569
    %v634 = verf.f32.pop %v570
    %v635 = verf.f32.pop %v571
    %v636 = verf.f32.pop %v572
    %v637 = verf.f32.pop %v573
    %v638 = verf.f32.pop %v574
    %v639 = verf.f32.pop %v575
    %v640 = verf.f32.pop %v576
    %v641 = verf.f32.pop %v577
    %v642 = verf.f32.pop %v578
    %v643 = verf.f32.pop %v579
    %v644 = verf.f32.pop %v580
    %v645 = verf.f32.pop %v581
    %v646 = verf.f32.pop %v582
    %v647 = verf.f32.pop %v583
    %v648 = verf.f32.pop %v584
    %v649 = verf.f32.pop %v585
    %v650 = verf.f32.pop %v586
    %v651 = verf.f32.pop %v587
    %v652 = verf.f32.pop %v588
    %v653 = verf.f32.pop %v589
    %v654 = verf.f32.pop %v590
    %v655 = verf.f32.pop %v591
    %v656 = verf.f32.pop %v592
    %v657 = verf.f32.pop %v593
    %v658 = verf.f32.pop %v594
    %v659 = verf.f32.pop %v595
    %v660 = verf.f32.pop %v596
    %v661 = verf.f32.pop %v597
    %v662 = verf.f32.pop %v598
    %v663 = verf.f32.pop %v599
    %v664 = verf.f32.pop %v600
    %v665 = verf.f32.pop %v601
    %v666 = verf.f32.pop %v602
    %v667 = verf.f32.pop %v603
    %v668 = verf.f32.pop %v604
    %v669 = verf.f32.pop %v605
    %v670 = verf.f32.pop %v606
    %v671 = verf.f32.pop %v607
    %v672 = verf.f32.pop %v608
    %v673 = verf.f32.pop %v609
    %v674 = verf.f32.pop %v610
    %v675 = verf.f32.pop %v611
    %v676 = verf.f32.pop %v612
    %v677 = verf.f32.pop %v613
    %v678 = verf.f32.pop %v614
    %v679 = verf.f32.pop %v615
    %v680 = verf.f32.pop %v616
    %v681 = verf.f32.pop %v617
    %v682 = verf.f32.pop %v618
    %v683 = verf.f32.pop %v619
    %v684 = verf.f32.pop %v620
    %v685 = verf.f32.pop %v621
    %v686 = verf.f32.pop %v622
    %v687 = verf.f32.pop %v623
    %v688 = verf.f32.pop %v624
    %v689 = verf.f32.pop %v625
    %v690 = verf.f32.pop %v626
    %v691 = verf.f32.pop %v627
    %v692 = verf.f32.pop %v628
    %v693 = verf.f32.pop %v629
    %v694 = vadd.f32 %v630, 1.0
    %v695 = vadd.f32 %v631, 1.0
    %v696 = vadd.f32 %v632, 1.0
    %v697 = vadd.f32 %v633, 1.0
    %v698 = vadd.f32 %v634, 1.0
    %v699 = vadd.f32 %v635, 1.0
    %v700 = vadd.f32 %v636, 1.0
    %v701 = vadd.f32 %v637, 1.0
    %v702 = vadd.f32 %v638, 1.0
    %v703 = vadd.f32 %v639, 1.0
    %v704 = vadd.f32 %v640, 1.0
    %v705 = vadd.f32 %v641, 1.0
    %v706 = vadd.f32 %v642, 1.0
    %v707 = vadd.f32 %v643, 1.0
    %v708 = vadd.f32 %v644, 1.0
    %v709 = vadd.f32 %v645, 1.0
    %v710 = vadd.f32 %v646, 1.0
    %v711 = vadd.f32 %v647, 1.0
    %v712 = vadd.f32 %v648, 1.0
    %v713 = vadd.f32 %v649, 1.0
    %v714 = vadd.f32 %v650, 1.0
    %v715 = vadd.f32 %v651, 1.0
    %v716 = vadd.f32 %v652, 1.0
    %v717 = vadd.f32 %v653, 1.0
    %v718 = vadd.f32 %v654, 1.0
    %v719 = vadd.f32 %v655, 1.0
    %v720 = vadd.f32 %v656, 1.0
    %v721 = vadd.f32 %v657, 1.0
    %v722 = vadd.f32 %v658, 1.0
    %v723 = vadd.f32 %v659, 1.0
    %v724 = vadd.f32 %v660, 1.0
    %v725 = vadd.f32 %v661, 1.0
    %v726 = vadd.f32 %v662, 1.0
    %v727 = vadd.f32 %v663, 1.0
    %v728 = vadd.f32 %v664, 1.0
    %v729 = vadd.f32 %v665, 1.0
    %v730 = vadd.f32 %v666, 1.0
    %v731 = vadd.f32 %v667, 1.0
    %v732 = vadd.f32 %v668, 1.0
    %v733 = vadd.f32 %v669, 1.0
    %v734 = vadd.f32 %v670, 1.0
    %v735 = vadd.f32 %v671, 1.0
    %v736 = vadd.f32 %v672, 1.0
    %v737 = vadd.f32 %v673, 1.0
    %v738 = vadd.f32 %v674, 1.0
    %v739 = vadd.f32 %v675, 1.0
    %v740 = vadd.f32 %v676, 1.0
    %v741 = vadd.f32 %v677, 1.0
    %v742 = vadd.f32 %v678, 1.0
    %v743 = vadd.f32 %v679, 1.0
    %v744 = vadd.f32 %v680, 1.0
    %v745 = vadd.f32 %v681, 1.0
    %v746 = vadd.f32 %v682, 1.0
    %v747 = vadd.f32 %v683, 1.0
    %v748 = vadd.f32 %v684, 1.0
    %v749 = vadd.f32 %v685, 1.0
    %v750 = vadd.f32 %v686, 1.0
    %v751 = vadd.f32 %v687, 1.0
    %v752 = vadd.f32 %v688, 1.0
    %v753 = vadd.f32 %v689, 1.0
    %v754 = vadd.f32 %v690, 1.0
    %v755 = vadd.f32 %v691, 1.0
    %v756 = vadd.f32 %v692, 1.0
    %v757 = vadd.f32 %v693, 1.0
    %v758 = vmul.f32 %v502, %v694
    %v759 = vmul.f32 %v503, %v695
    %v760 = vmul.f32 %v504, %v696
    %v761 = vmul.f32 %v505, %v697
    %v762 = vmul.f32 %v506, %v698
    %v763 = vmul.f32 %v507, %v699
    %v764 = vmul.f32 %v508, %v700
    %v765 = vmul.f32 %v509, %v701
    %v766 = vmul.f32 %v510, %v702
    %v767 = vmul.f32 %v511, %v703
    %v768 = vmul.f32 %v512, %v704
    %v769 = vmul.f32 %v513, %v705
    %v770 = vmul.f32 %v514, %v706
    %v771 = vmul.f32 %v515, %v707
    %v772 = vmul.f32 %v516, %v708
    %v773 = vmul.f32 %v517, %v709
    %v774 = vmul.f32 %v518, %v710
    %v775 = vmul.f32 %v519, %v711
    %v776 = vmul.f32 %v520, %v712
    %v777 = vmul.f32 %v521, %v713
    %v778 = vmul.f32 %v522, %v714
    %v779 = vmul.f32 %v523, %v715
    %v780 = vmul.f32 %v524, %v716
    %v781 = vmul.f32 %v525, %v717
    %v782 = vmul.f32 %v526, %v718
    %v783 = vmul.f32 %v527, %v719
    %v784 = vmul.f32 %v528, %v720
    %v785 = vmul.f32 %v529, %v721
    %v786 = vmul.f32 %v530, %v722
    %v787 = vmul.f32 %v531, %v723
    %v788 = vmul.f32 %v532, %v724
    %v789 = vmul.f32 %v533, %v725
    %v790 = vmul.f32 %v534, %v726
    %v791 = vmul.f32 %v535, %v727
    %v792 = vmul.f32 %v536, %v728
    %v793 = vmul.f32 %v537, %v729
    %v794 = vmul.f32 %v538, %v730
    %v795 = vmul.f32 %v539, %v731
    %v796 = vmul.f32 %v540, %v732
    %v797 = vmul.f32 %v541, %v733
    %v798 = vmul.f32 %v542, %v734
    %v799 = vmul.f32 %v543, %v735
    %v800 = vmul.f32 %v544, %v736
    %v801 = vmul.f32 %v545, %v737
    %v802 = vmul.f32 %v546, %v738
    %v803 = vmul.f32 %v547, %v739
    %v804 = vmul.f32 %v548, %v740
    %v805 = vmul.f32 %v549, %v741
    %v806 = vmul.f32 %v550, %v742
    %v807 = vmul.f32 %v551, %v743
    %v808 = vmul.f32 %v552, %v744
    %v809 = vmul.f32 %v553, %v745
    %v810 = vmul.f32 %v554, %v746
    %v811 = vmul.f32 %v555, %v747
    %v812 = vmul.f32 %v556, %v748
    %v813 = vmul.f32 %v557, %v749
    %v814 = vmul.f32 %v558, %v750
    %v815 = vmul.f32 %v559, %v751
    %v816 = vmul.f32 %v560, %v752
    %v817 = vmul.f32 %v561, %v753
    %v818 = vmul.f32 %v562, %v754
    %v819 = vmul.f32 %v563, %v755
    %v820 = vmul.f32 %v564, %v756
    %v821 = vmul.f32 %v565, %v757
    %v822 = vld [vmem:[#allocation2] sm:$0xff]
    %v823 = vld [vmem:[#allocation2 + $0x8] sm:$0xff]
    %v824 = vld [vmem:[#allocation2 + $0x10] sm:$0xff]
    %v825 = vld [vmem:[#allocation2 + $0x18] sm:$0xff]
    %v826 = vld [vmem:[#allocation2 + $0x20] sm:$0xff]
    %v827 = vld [vmem:[#allocation2 + $0x28] sm:$0xff]
    %v828 = vld [vmem:[#allocation2 + $0x30] sm:$0xff]
    %v829 = vld [vmem:[#allocation2 + $0x38] sm:$0xff]
    %v830 = vld [vmem:[#allocation2 + $0x40] sm:$0xff]
    %v831 = vld [vmem:[#allocation2 + $0x48] sm:$0xff]
    %v832 = vld [vmem:[#allocation2 + $0x50] sm:$0xff]
    %v833 = vld [vmem:[#allocation2 + $0x58] sm:$0xff]
    %v834 = vld [vmem:[#allocation2 + $0x60] sm:$0xff]
    %v835 = vld [vmem:[#allocation2 + $0x68] sm:$0xff]
    %v836 = vld [vmem:[#allocation2 + $0x70] sm:$0xff]
    %v837 = vld [vmem:[#allocation2 + $0x78] sm:$0xff]
    %v838 = vld [vmem:[#allocation8] sm:$0xff]
    %v839 = vld [vmem:[#allocation8 + $0x8] sm:$0xff]
    %v840 = vld [vmem:[#allocation8 + $0x10] sm:$0xff]
    %v841 = vld [vmem:[#allocation8 + $0x18] sm:$0xff]
    %v842 = vld [vmem:[#allocation8 + $0x20] sm:$0xff]
    %v843 = vld [vmem:[#allocation8 + $0x28] sm:$0xff]
    %v844 = vld [vmem:[#allocation8 + $0x30] sm:$0xff]
    %v845 = vld [vmem:[#allocation8 + $0x38] sm:$0xff]
    %v846 = vld [vmem:[#allocation8 + $0x40] sm:$0xff]
    %v847 = vld [vmem:[#allocation8 + $0x48] sm:$0xff]
    %v848 = vld [vmem:[#allocation8 + $0x50] sm:$0xff]
    %v849 = vld [vmem:[#allocation8 + $0x58] sm:$0xff]
    %v850 = vld [vmem:[#allocation8 + $0x60] sm:$0xff]
    %v851 = vld [vmem:[#allocation8 + $0x68] sm:$0xff]
    %v852 = vld [vmem:[#allocation8 + $0x70] sm:$0xff]
    %v853 = vld [vmem:[#allocation8 + $0x78] sm:$0xff]
    %v854 = vld [vmem:[#allocation8 + $0x80] sm:$0xff]
    %v855 = vld [vmem:[#allocation8 + $0x88] sm:$0xff]
    %v856 = vld [vmem:[#allocation8 + $0x90] sm:$0xff]
    %v857 = vld [vmem:[#allocation8 + $0x98] sm:$0xff]
    %v858 = vld [vmem:[#allocation8 + $0xa0] sm:$0xff]
    %v859 = vld [vmem:[#allocation8 + $0xa8] sm:$0xff]
    %v860 = vld [vmem:[#allocation8 + $0xb0] sm:$0xff]
    %v861 = vld [vmem:[#allocation8 + $0xb8] sm:$0xff]
    %v862 = vld [vmem:[#allocation8 + $0xc0] sm:$0xff]
    %v863 = vld [vmem:[#allocation8 + $0xc8] sm:$0xff]
    %v864 = vld [vmem:[#allocation8 + $0xd0] sm:$0xff]
    %v865 = vld [vmem:[#allocation8 + $0xd8] sm:$0xff]
    %v866 = vld [vmem:[#allocation8 + $0xe0] sm:$0xff]
    %v867 = vld [vmem:[#allocation8 + $0xe8] sm:$0xff]
    %v868 = vld [vmem:[#allocation8 + $0xf0] sm:$0xff]
    %v869 = vld [vmem:[#allocation8 + $0xf8] sm:$0xff]
    %v870 = vld [vmem:[#allocation8 + $0x100] sm:$0xff]
    %v871 = vld [vmem:[#allocation8 + $0x108] sm:$0xff]
    %v872 = vld [vmem:[#allocation8 + $0x110] sm:$0xff]
    %v873 = vld [vmem:[#allocation8 + $0x118] sm:$0xff]
    %v874 = vld [vmem:[#allocation8 + $0x120] sm:$0xff]
    %v875 = vld [vmem:[#allocation8 + $0x128] sm:$0xff]
    %v876 = vld [vmem:[#allocation8 + $0x130] sm:$0xff]
    %v877 = vld [vmem:[#allocation8 + $0x138] sm:$0xff]
    %v878 = vld [vmem:[#allocation8 + $0x140] sm:$0xff]
    %v879 = vld [vmem:[#allocation8 + $0x148] sm:$0xff]
    %v880 = vld [vmem:[#allocation8 + $0x150] sm:$0xff]
    %v881 = vld [vmem:[#allocation8 + $0x158] sm:$0xff]
    %v882 = vld [vmem:[#allocation8 + $0x160] sm:$0xff]
    %v883 = vld [vmem:[#allocation8 + $0x168] sm:$0xff]
    %v884 = vld [vmem:[#allocation8 + $0x170] sm:$0xff]
    %v885 = vld [vmem:[#allocation8 + $0x178] sm:$0xff]
    %v886 = vld [vmem:[#allocation8 + $0x180] sm:$0xff]
    %v887 = vld [vmem:[#allocation8 + $0x188] sm:$0xff]
    %v888 = vld [vmem:[#allocation8 + $0x190] sm:$0xff]
    %v889 = vld [vmem:[#allocation8 + $0x198] sm:$0xff]
    %v890 = vld [vmem:[#allocation8 + $0x1a0] sm:$0xff]
    %v891 = vld [vmem:[#allocation8 + $0x1a8] sm:$0xff]
    %v892 = vld [vmem:[#allocation8 + $0x1b0] sm:$0xff]
    %v893 = vld [vmem:[#allocation8 + $0x1b8] sm:$0xff]
    %v894 = vld [vmem:[#allocation8 + $0x1c0] sm:$0xff]
    %v895 = vld [vmem:[#allocation8 + $0x1c8] sm:$0xff]
    %v896 = vld [vmem:[#allocation8 + $0x1d0] sm:$0xff]
    %v897 = vld [vmem:[#allocation8 + $0x1d8] sm:$0xff]
    %v898 = vld [vmem:[#allocation8 + $0x1e0] sm:$0xff]
    %v899 = vld [vmem:[#allocation8 + $0x1e8] sm:$0xff]
    %v900 = vld [vmem:[#allocation8 + $0x1f0] sm:$0xff]
    %v901 = vld [vmem:[#allocation8 + $0x1f8] sm:$0xff]
    %902 = vmatprep.subr.mxu0 0.0
    %903 = vmatpush1.msra.mxu0 %v838
    %904 = vmatprep.subr.mxu0 0.0
    %905 = vmatpush1.msra.mxu0 %v839
    %906 = vmatprep.subr.mxu0 0.0
    %907 = vmatpush1.msra.mxu0 %v840
    %908 = vmatprep.subr.mxu0 0.0
    %909 = vmatpush1.msra.mxu0 %v841
    %910 = vmatprep.subr.mxu0 0.0
    %911 = vmatpush1.msra.mxu0 %v842
    %912 = vmatprep.subr.mxu0 0.0
    %913 = vmatpush1.msra.mxu0 %v843
    %914 = vmatprep.subr.mxu0 0.0
    %915 = vmatpush1.msra.mxu0 %v844
    %916 = vmatprep.subr.mxu0 0.0
    %917 = vmatpush1.msra.mxu0 %v845
    %918 = vmatprep.subr.mxu0 0.0
    %919 = vmatpush1.msra.mxu0 %v846
    %920 = vmatprep.subr.mxu0 0.0
    %921 = vmatpush1.msra.mxu0 %v847
    %922 = vmatprep.subr.mxu0 0.0
    %923 = vmatpush1.msra.mxu0 %v848
    %924 = vmatprep.subr.mxu0 0.0
    %925 = vmatpush1.msra.mxu0 %v849
    %926 = vmatprep.subr.mxu0 0.0
    %927 = vmatpush1.msra.mxu0 %v850
    %928 = vmatprep.subr.mxu0 0.0
    %929 = vmatpush1.msra.mxu0 %v851
    %930 = vmatprep.subr.mxu0 0.0
    %931 = vmatpush1.msra.mxu0 %v852
    %932 = vmatprep.subr.mxu0 0.0
    %933 = vmatpush1.msra.mxu0 %v853
    %934 = vmatprep.subr.mxu0 0.0
    %935 = vmatpush1.msra.mxu0 %v854
    %936 = vmatprep.subr.mxu0 0.0
    %937 = vmatpush1.msra.mxu0 %v855
    %938 = vmatprep.subr.mxu0 0.0
    %939 = vmatpush1.msra.mxu0 %v856
    %940 = vmatprep.subr.mxu0 0.0
    %941 = vmatpush1.msra.mxu0 %v857
    %942 = vmatprep.subr.mxu0 0.0
    %943 = vmatpush1.msra.mxu0 %v858
    %944 = vmatprep.subr.mxu0 0.0
    %945 = vmatpush1.msra.mxu0 %v859
    %946 = vmatprep.subr.mxu0 0.0
    %947 = vmatpush1.msra.mxu0 %v860
    %948 = vmatprep.subr.mxu0 0.0
    %949 = vmatpush1.msra.mxu0 %v861
    %950 = vmatprep.subr.mxu0 0.0
    %951 = vmatpush1.msra.mxu0 %v862
    %952 = vmatprep.subr.mxu0 0.0
    %953 = vmatpush1.msra.mxu0 %v863
    %954 = vmatprep.subr.mxu0 0.0
    %955 = vmatpush1.msra.mxu0 %v864
    %956 = vmatprep.subr.mxu0 0.0
    %957 = vmatpush1.msra.mxu0 %v865
    %958 = vmatprep.subr.mxu0 0.0
    %959 = vmatpush1.msra.mxu0 %v866
    %960 = vmatprep.subr.mxu0 0.0
    %961 = vmatpush1.msra.mxu0 %v867
    %962 = vmatprep.subr.mxu0 0.0
    %963 = vmatpush1.msra.mxu0 %v868
    %964 = vmatprep.subr.mxu0 0.0
    %965 = vmatpush1.msra.mxu0 %v869
    %966 = vmatprep.mubr.f32.mxu0 %v759
    %967 = vmatmul.mubr.f32.gmra.mrb[0].mxu0 %v758
    %v968 = vpop.f32.mrb[0].mxu0
    %v969 = vadd.f32 0.0, %v968
    %v970 = vpop.f32.mrb[0].mxu0
    %971 = vmatprep.mubr.f32.mxu0 %v763
    %972 = vmatmul.mubr.f32.gmra.mrb[0].mxu0 %v762
    %v973 = vpop.f32.mrb[0].mxu0
    %v974 = vadd.f32 0.0, %v973
    %v975 = vpop.f32.mrb[0].mxu0
    %976 = vmatprep.mubr.f32.mxu0 %v767
    %977 = vmatmul.mubr.f32.gmra.mrb[0].mxu0 %v766
    %v978 = vpop.f32.mrb[0].mxu0
    %v979 = vadd.f32 0.0, %v978
    %v980 = vpop.f32.mrb[0].mxu0
    %981 = vmatprep.mubr.f32.mxu0 %v771
    %982 = vmatmul.mubr.f32.gmra.mrb[0].mxu0 %v770
    %v983 = vpop.f32.mrb[0].mxu0
    %v984 = vadd.f32 0.0, %v983
    %v985 = vpop.f32.mrb[0].mxu0
    %986 = vmatprep.mubr.f32.mxu0 %v775
    %987 = vmatmul.mubr.f32.gmra.mrb[0].mxu0 %v774
    %v988 = vpop.f32.mrb[0].mxu0
    %v989 = vadd.f32 0.0, %v988
    %v990 = vpop.f32.mrb[0].mxu0
    %991 = vmatprep.mubr.f32.mxu0 %v779
    %992 = vmatmul.mubr.f32.gmra.mrb[0].mxu0 %v778
    %v993 = vpop.f32.mrb[0].mxu0
    %v994 = vadd.f32 0.0, %v993
    %v995 = vpop.f32.mrb[0].mxu0
    %996 = vmatprep.mubr.f32.mxu0 %v783
    %997 = vmatmul.mubr.f32.gmra.mrb[0].mxu0 %v782
    %v998 = vpop.f32.mrb[0].mxu0
    %v999 = vadd.f32 0.0, %v998
    %v1000 = vpop.f32.mrb[0].mxu0
    %1001 = vmatprep.mubr.f32.mxu0 %v787
    %1002 = vmatmul.mubr.f32.gmra.mrb[0].mxu0 %v786
    %v1003 = vpop.f32.mrb[0].mxu0
    %v1004 = vadd.f32 0.0, %v1003
    %v1005 = vpop.f32.mrb[0].mxu0
    %1006 = vmatprep.mubr.f32.mxu0 %v791
    %1007 = vmatmul.mubr.f32.gmra.mrb[0].mxu0 %v790
    %v1008 = vpop.f32.mrb[0].mxu0
    %v1009 = vadd.f32 0.0, %v1008
    %v1010 = vpop.f32.mrb[0].mxu0
    %1011 = vmatprep.mubr.f32.mxu0 %v795
    %1012 = vmatmul.mubr.f32.gmra.mrb[0].mxu0 %v794
    %v1013 = vpop.f32.mrb[0].mxu0
    %v1014 = vadd.f32 0.0, %v1013
    %v1015 = vpop.f32.mrb[0].mxu0
    %1016 = vmatprep.mubr.f32.mxu0 %v799
    %1017 = vmatmul.mubr.f32.gmra.mrb[0].mxu0 %v798
    %v1018 = vpop.f32.mrb[0].mxu0
    %v1019 = vadd.f32 0.0, %v1018
    %v1020 = vpop.f32.mrb[0].mxu0
    %1021 = vmatprep.mubr.f32.mxu0 %v803
    %1022 = vmatmul.mubr.f32.gmra.mrb[0].mxu0 %v802
    %v1023 = vpop.f32.mrb[0].mxu0
    %v1024 = vadd.f32 0.0, %v1023
    %v1025 = vpop.f32.mrb[0].mxu0
    %1026 = vmatprep.mubr.f32.mxu0 %v807
    %1027 = vmatmul.mubr.f32.gmra.mrb[0].mxu0 %v806
    %v1028 = vpop.f32.mrb[0].mxu0
    %v1029 = vadd.f32 0.0, %v1028
    %v1030 = vpop.f32.mrb[0].mxu0
    %1031 = vmatprep.mubr.f32.mxu0 %v811
    %1032 = vmatmul.mubr.f32.gmra.mrb[0].mxu0 %v810
    %v1033 = vpop.f32.mrb[0].mxu0
    %v1034 = vadd.f32 0.0, %v1033
    %v1035 = vpop.f32.mrb[0].mxu0
    %1036 = vmatprep.mubr.f32.mxu0 %v815
    %1037 = vmatmul.mubr.f32.gmra.mrb[0].mxu0 %v814
    %v1038 = vpop.f32.mrb[0].mxu0
    %v1039 = vadd.f32 0.0, %v1038
    %v1040 = vpop.f32.mrb[0].mxu0
    %1041 = vmatprep.mubr.f32.mxu0 %v819
    %1042 = vmatmul.mubr.f32.gmra.mrb[0].mxu0 %v818
    %v1043 = vpop.f32.mrb[0].mxu0
    %v1044 = vadd.f32 0.0, %v1043
    %v1045 = vpop.f32.mrb[0].mxu0
    %1046 = vdwg.mxu0
    %1047 = vmatprep.subr.mxu0 0.0
    %1048 = vmatpush1.msra.mxu0 %v870
    %1049 = vmatprep.subr.mxu0 0.0
    %1050 = vmatpush1.msra.mxu0 %v871
    %1051 = vmatprep.subr.mxu0 0.0
    %1052 = vmatpush1.msra.mxu0 %v872
    %1053 = vmatprep.subr.mxu0 0.0
    %1054 = vmatpush1.msra.mxu0 %v873
    %1055 = vmatprep.subr.mxu0 0.0
    %1056 = vmatpush1.msra.mxu0 %v874
    %1057 = vmatprep.subr.mxu0 0.0
    %1058 = vmatpush1.msra.mxu0 %v875
    %1059 = vmatprep.subr.mxu0 0.0
    %1060 = vmatpush1.msra.mxu0 %v876
    %1061 = vmatprep.subr.mxu0 0.0
    %1062 = vmatpush1.msra.mxu0 %v877
    %1063 = vmatprep.subr.mxu0 0.0
    %1064 = vmatpush1.msra.mxu0 %v878
    %1065 = vmatprep.subr.mxu0 0.0
    %1066 = vmatpush1.msra.mxu0 %v879
    %1067 = vmatprep.subr.mxu0 0.0
    %1068 = vmatpush1.msra.mxu0 %v880
    %1069 = vmatprep.subr.mxu0 0.0
    %1070 = vmatpush1.msra.mxu0 %v881
    %1071 = vmatprep.subr.mxu0 0.0
    %1072 = vmatpush1.msra.mxu0 %v882
    %1073 = vmatprep.subr.mxu0 0.0
    %1074 = vmatpush1.msra.mxu0 %v883
    %1075 = vmatprep.subr.mxu0 0.0
    %1076 = vmatpush1.msra.mxu0 %v884
    %1077 = vmatprep.subr.mxu0 0.0
    %1078 = vmatpush1.msra.mxu0 %v885
    %1079 = vmatprep.subr.mxu0 0.0
    %1080 = vmatpush1.msra.mxu0 %v886
    %1081 = vmatprep.subr.mxu0 0.0
    %1082 = vmatpush1.msra.mxu0 %v887
    %1083 = vmatprep.subr.mxu0 0.0
    %1084 = vmatpush1.msra.mxu0 %v888
    %1085 = vmatprep.subr.mxu0 0.0
    %1086 = vmatpush1.msra.mxu0 %v889
    %1087 = vmatprep.subr.mxu0 0.0
    %1088 = vmatpush1.msra.mxu0 %v890
    %1089 = vmatprep.subr.mxu0 0.0
    %1090 = vmatpush1.msra.mxu0 %v891
    %1091 = vmatprep.subr.mxu0 0.0
    %1092 = vmatpush1.msra.mxu0 %v892
    %1093 = vmatprep.subr.mxu0 0.0
    %1094 = vmatpush1.msra.mxu0 %v893
    %1095 = vmatprep.subr.mxu0 0.0
    %1096 = vmatpush1.msra.mxu0 %v894
    %1097 = vmatprep.subr.mxu0 0.0
    %1098 = vmatpush1.msra.mxu0 %v895
    %1099 = vmatprep.subr.mxu0 0.0
    %1100 = vmatpush1.msra.mxu0 %v896
    %1101 = vmatprep.subr.mxu0 0.0
    %1102 = vmatpush1.msra.mxu0 %v897
    %1103 = vmatprep.subr.mxu0 0.0
    %1104 = vmatpush1.msra.mxu0 %v898
    %1105 = vmatprep.subr.mxu0 0.0
    %1106 = vmatpush1.msra.mxu0 %v899
    %1107 = vmatprep.subr.mxu0 0.0
    %1108 = vmatpush1.msra.mxu0 %v900
    %1109 = vmatprep.subr.mxu0 0.0
    %1110 = vmatpush1.msra.mxu0 %v901
    %1111 = vmatprep.mubr.f32.mxu0 %v761
    %1112 = vmatmul.mubr.f32.gmra.mrb[0].mxu0 %v760
    %v1113 = vpop.f32.mrb[0].mxu0
    %v1114 = vadd.f32 %v969, %v1113
    %v1115 = vpop.f32.mrb[0].mxu0
    %1116 = vmatprep.mubr.f32.mxu0 %v765
    %1117 = vmatmul.mubr.f32.gmra.mrb[0].mxu0 %v764
    %v1118 = vpop.f32.mrb[0].mxu0
    %v1119 = vadd.f32 %v974, %v1118
    %v1120 = vpop.f32.mrb[0].mxu0
    %1121 = vmatprep.mubr.f32.mxu0 %v769
    %1122 = vmatmul.mubr.f32.gmra.mrb[0].mxu0 %v768
    %v1123 = vpop.f32.mrb[0].mxu0
    %v1124 = vadd.f32 %v979, %v1123
    %v1125 = vpop.f32.mrb[0].mxu0
    %1126 = vmatprep.mubr.f32.mxu0 %v773
    %1127 = vmatmul.mubr.f32.gmra.mrb[0].mxu0 %v772
    %v1128 = vpop.f32.mrb[0].mxu0
    %v1129 = vadd.f32 %v984, %v1128
    %v1130 = vpop.f32.mrb[0].mxu0
    %1131 = vmatprep.mubr.f32.mxu0 %v777
    %1132 = vmatmul.mubr.f32.gmra.mrb[0].mxu0 %v776
    %v1133 = vpop.f32.mrb[0].mxu0
    %v1134 = vadd.f32 %v989, %v1133
    %v1135 = vpop.f32.mrb[0].mxu0
    %1136 = vmatprep.mubr.f32.mxu0 %v781
    %1137 = vmatmul.mubr.f32.gmra.mrb[0].mxu0 %v780
    %v1138 = vpop.f32.mrb[0].mxu0
    %v1139 = vadd.f32 %v994, %v1138
    %v1140 = vpop.f32.mrb[0].mxu0
    %1141 = vmatprep.mubr.f32.mxu0 %v785
    %1142 = vmatmul.mubr.f32.gmra.mrb[0].mxu0 %v784
    %v1143 = vpop.f32.mrb[0].mxu0
    %v1144 = vadd.f32 %v999, %v1143
    %v1145 = vpop.f32.mrb[0].mxu0
    %1146 = vmatprep.mubr.f32.mxu0 %v789
    %1147 = vmatmul.mubr.f32.gmra.mrb[0].mxu0 %v788
    %v1148 = vpop.f32.mrb[0].mxu0
    %v1149 = vadd.f32 %v1004, %v1148
    %v1150 = vpop.f32.mrb[0].mxu0
    %1151 = vmatprep.mubr.f32.mxu0 %v793
    %1152 = vmatmul.mubr.f32.gmra.mrb[0].mxu0 %v792
    %v1153 = vpop.f32.mrb[0].mxu0
    %v1154 = vadd.f32 %v1009, %v1153
    %v1155 = vpop.f32.mrb[0].mxu0
    %1156 = vmatprep.mubr.f32.mxu0 %v797
    %1157 = vmatmul.mubr.f32.gmra.mrb[0].mxu0 %v796
    %v1158 = vpop.f32.mrb[0].mxu0
    %v1159 = vadd.f32 %v1014, %v1158
    %v1160 = vpop.f32.mrb[0].mxu0
    %1161 = vmatprep.mubr.f32.mxu0 %v801
    %1162 = vmatmul.mubr.f32.gmra.mrb[0].mxu0 %v800
    %v1163 = vpop.f32.mrb[0].mxu0
    %v1164 = vadd.f32 %v1019, %v1163
    %v1165 = vpop.f32.mrb[0].mxu0
    %1166 = vmatprep.mubr.f32.mxu0 %v805
    %1167 = vmatmul.mubr.f32.gmra.mrb[0].mxu0 %v804
    %v1168 = vpop.f32.mrb[0].mxu0
    %v1169 = vadd.f32 %v1024, %v1168
    %v1170 = vpop.f32.mrb[0].mxu0
    %1171 = vmatprep.mubr.f32.mxu0 %v809
    %1172 = vmatmul.mubr.f32.gmra.mrb[0].mxu0 %v808
    %v1173 = vpop.f32.mrb[0].mxu0
    %v1174 = vadd.f32 %v1029, %v1173
    %v1175 = vpop.f32.mrb[0].mxu0
    %1176 = vmatprep.mubr.f32.mxu0 %v813
    %1177 = vmatmul.mubr.f32.gmra.mrb[0].mxu0 %v812
    %v1178 = vpop.f32.mrb[0].mxu0
    %v1179 = vadd.f32 %v1034, %v1178
    %v1180 = vpop.f32.mrb[0].mxu0
    %1181 = vmatprep.mubr.f32.mxu0 %v817
    %1182 = vmatmul.mubr.f32.gmra.mrb[0].mxu0 %v816
    %v1183 = vpop.f32.mrb[0].mxu0
    %v1184 = vadd.f32 %v1039, %v1183
    %v1185 = vpop.f32.mrb[0].mxu0
    %1186 = vmatprep.mubr.f32.mxu0 %v821
    %1187 = vmatmul.mubr.f32.gmra.mrb[0].mxu0 %v820
    %v1188 = vpop.f32.mrb[0].mxu0
    %v1189 = vadd.f32 %v1044, %v1188
    %v1190 = vpop.f32.mrb[0].mxu0
    %1191 = vdwg.mxu0
    %v1192 = vadd.f32 %v822, %v1114
    %v1193 = vadd.f32 %v823, %v1119
    %v1194 = vadd.f32 %v824, %v1124
    %v1195 = vadd.f32 %v825, %v1129
    %v1196 = vadd.f32 %v826, %v1134
    %v1197 = vadd.f32 %v827, %v1139
    %v1198 = vadd.f32 %v828, %v1144
    %v1199 = vadd.f32 %v829, %v1149
    %v1200 = vadd.f32 %v830, %v1154
    %v1201 = vadd.f32 %v831, %v1159
    %v1202 = vadd.f32 %v832, %v1164
    %v1203 = vadd.f32 %v833, %v1169
    %v1204 = vadd.f32 %v834, %v1174
    %v1205 = vadd.f32 %v835, %v1179
    %v1206 = vadd.f32 %v836, %v1184
    %v1207 = vadd.f32 %v837, %v1189
    %1208 = vst [vmem:[#allocation2] sm:$0xff] %v1192
    %1209 = vst [vmem:[#allocation2 + $0x8] sm:$0xff] %v1193
    %1210 = vst [vmem:[#allocation2 + $0x10] sm:$0xff] %v1194
    %1211 = vst [vmem:[#allocation2 + $0x18] sm:$0xff] %v1195
    %1212 = vst [vmem:[#allocation2 + $0x20] sm:$0xff] %v1196
    %1213 = vst [vmem:[#allocation2 + $0x28] sm:$0xff] %v1197
    %1214 = vst [vmem:[#allocation2 + $0x30] sm:$0xff] %v1198
    %1215 = vst [vmem:[#allocation2 + $0x38] sm:$0xff] %v1199
    %1216 = vst [vmem:[#allocation2 + $0x40] sm:$0xff] %v1200
    %1217 = vst [vmem:[#allocation2 + $0x48] sm:$0xff] %v1201
    %1218 = vst [vmem:[#allocation2 + $0x50] sm:$0xff] %v1202
    %1219 = vst [vmem:[#allocation2 + $0x58] sm:$0xff] %v1203
    %1220 = vst [vmem:[#allocation2 + $0x60] sm:$0xff] %v1204
    %1221 = vst [vmem:[#allocation2 + $0x68] sm:$0xff] %v1205
    %1222 = vst [vmem:[#allocation2 + $0x70] sm:$0xff] %v1206
    %1223 = vst [vmem:[#allocation2 + $0x78] sm:$0xff] %v1207
    %v1224 = vld [vmem:[#allocation2] sm:$0xff]
    %v1225 = vld [vmem:[#allocation2 + $0x8] sm:$0xff]
    %v1226 = vld [vmem:[#allocation2 + $0x10] sm:$0xff]
    %v1227 = vld [vmem:[#allocation2 + $0x18] sm:$0xff]
    %v1228 = vld [vmem:[#allocation2 + $0x20] sm:$0xff]
    %v1229 = vld [vmem:[#allocation2 + $0x28] sm:$0xff]
    %v1230 = vld [vmem:[#allocation2 + $0x30] sm:$0xff]
    %v1231 = vld [vmem:[#allocation2 + $0x38] sm:$0xff]
    %v1232 = vld [vmem:[#allocation2 + $0x40] sm:$0xff]
    %v1233 = vld [vmem:[#allocation2 + $0x48] sm:$0xff]
    %v1234 = vld [vmem:[#allocation2 + $0x50] sm:$0xff]
    %v1235 = vld [vmem:[#allocation2 + $0x58] sm:$0xff]
    %v1236 = vld [vmem:[#allocation2 + $0x60] sm:$0xff]
    %v1237 = vld [vmem:[#allocation2 + $0x68] sm:$0xff]
    %v1238 = vld [vmem:[#allocation2 + $0x70] sm:$0xff]
    %v1239 = vld [vmem:[#allocation2 + $0x78] sm:$0xff]
    %v1240 = vld [vmem:[%s4] sm:$0x1]
    %v1242 = vlaneseq
    %v1243 = vshrl.u32 %v1242, 7
    %v1244 = vsub.s32 0, %v1243
    %v1245 = vrot.slane %v1240, %v1244
    %v1247 = vadd.f32 %v1224, %v1245
    %v1248 = vadd.f32 %v1225, %v1245
    %v1249 = vadd.f32 %v1226, %v1245
    %v1250 = vadd.f32 %v1227, %v1245
    %v1251 = vadd.f32 %v1228, %v1245
    %v1252 = vadd.f32 %v1229, %v1245
    %v1253 = vadd.f32 %v1230, %v1245
    %v1254 = vadd.f32 %v1231, %v1245
    %v1255 = vadd.f32 %v1232, %v1245
    %v1256 = vadd.f32 %v1233, %v1245
    %v1257 = vadd.f32 %v1234, %v1245
    %v1258 = vadd.f32 %v1235, %v1245
    %v1259 = vadd.f32 %v1236, %v1245
    %v1260 = vadd.f32 %v1237, %v1245
    %v1261 = vadd.f32 %v1238, %v1245
    %v1262 = vadd.f32 %v1239, %v1245
    %1263 = vst [vmem:[#allocation9] sm:$0xff] %v1247
    %1264 = vst [vmem:[#allocation9 + $0x8] sm:$0xff] %v1248
    %1265 = vst [vmem:[#allocation9 + $0x10] sm:$0xff] %v1249
    %1266 = vst [vmem:[#allocation9 + $0x18] sm:$0xff] %v1250
    %1267 = vst [vmem:[#allocation9 + $0x20] sm:$0xff] %v1251
    %1268 = vst [vmem:[#allocation9 + $0x28] sm:$0xff] %v1252
    %1269 = vst [vmem:[#allocation9 + $0x30] sm:$0xff] %v1253
    %1270 = vst [vmem:[#allocation9 + $0x38] sm:$0xff] %v1254
    %1271 = vst [vmem:[#allocation9 + $0x40] sm:$0xff] %v1255
    %1272 = vst [vmem:[#allocation9 + $0x48] sm:$0xff] %v1256
    %1273 = vst [vmem:[#allocation9 + $0x50] sm:$0xff] %v1257
    %1274 = vst [vmem:[#allocation9 + $0x58] sm:$0xff] %v1258
    %1275 = vst [vmem:[#allocation9 + $0x60] sm:$0xff] %v1259
    %1276 = vst [vmem:[#allocation9 + $0x68] sm:$0xff] %v1260
    %1277 = vst [vmem:[#allocation9 + $0x70] sm:$0xff] %v1261
    %1278 = vst [vmem:[#allocation9 + $0x78] sm:$0xff] %v1262
    // Predicated region
    $region34: #{tpu_custom_call.1} parent=1 // pred_check
      _
    $region35: #{tpu_custom_call.1} parent=1 // pred_check_branch
      %1280 = sbr.rel (0) target = $region37
    $region36: #{tpu_custom_call.1} parent=1 // pred_region
      %s1282 = ssub.s32 2048, 2048
      %1283 = vsyncadd [#allocation5], %s1282
      %s1284 = sshll.u32 [#allocation9], 4
      %s1285 = int_to_ptr.vmem [resolvable:$true] %s1284
      %1290 = dma.vmem_to_hbm [thread:$0]  %s1285, 2048, %s5, [#allocation5], 128, 128, 8
    $region37: #{tpu_custom_call.1} parent=1 // pred_fallthru
      _
    // Predicated region
    $region38: #{tpu_custom_call.1} parent=1 // pred_check
      _
    $region39: #{tpu_custom_call.1} parent=1 // pred_check_branch
      %1292 = sbr.rel (0) target = $region41
    $region40: #{tpu_custom_call.1} parent=1 // pred_region
      %1293 = dma.done [#allocation5], 2048
    $region41: #{tpu_custom_call.1} parent=1 // pred_fallthru
      _
    %1294 = vsyncpa [#allocation4], 1
    %1295 = vsyncpa [#allocation7], 1
    %1296 = vsyncpa [#allocation5], 1

</llo_original>
